<compile_context>
chip_gen: v5e
topology: v5e:2x2
jax: 0.10.0
libtpu: 0.0.40
codegen_flags: <defaults>
</compile_context>

<pallas_src>
import functools

import jax
import jax.numpy as jnp
from jax import lax
from jax.experimental import pallas as pl
from jax.experimental.pallas import tpu as pltpu


def _PAR(n):
    return pltpu.CompilerParams(dimension_semantics=("parallel",) * n)


def _pick_tile(n, cap):
    """Largest divisor of n that is <= cap, preferring multiples of 8 (or n itself)."""
    cap = int(max(1, min(n, cap)))
    for t in range(cap, 0, -1):
        if n % t == 0 and (t % 8 == 0 or t == n):
            return t
    for t in range(cap, 0, -1):
        if n % t == 0:
            return t
    return n


# ----------------------------------------------------------------------------
# Pallas kernels
# ----------------------------------------------------------------------------

def _ln_matmul_kernel(x_ref, lnw_ref, lnb_ref, w_ref, bias_ref, o_ref):
    # Fused WithBias LayerNorm (over channels) + 1x1 conv (row-wise matmul + bias).
    x = x_ref[...].astype(jnp.float32)
    mu = jnp.mean(x, axis=-1, keepdims=True)
    var = jnp.mean((x - mu) ** 2, axis=-1, keepdims=True)
    xn = (x - mu) * lax.rsqrt(var + 1e-5) * lnw_ref[...] + lnb_ref[...]
    acc = jnp.dot(xn, w_ref[...].astype(jnp.float32),
                  preferred_element_type=jnp.float32) + bias_ref[...]
    o_ref[...] = acc.astype(o_ref.dtype)


def _dwconv3x3_kernel(x_ref, top_ref, bot_ref, w_ref, b_ref, o_ref, *, th, w):
    # Depthwise 3x3, stride 1, on an UNPADDED channels-last image.
    #   x_ref   : (1, th, w, c)  center row tile (auto-pipelined)
    #   top_ref : (1, 1,  w, c)  row (hi*th - 1), clamped at the top edge
    #   bot_ref : (1, 1,  w, c)  row (hi*th + th), clamped at the bottom edge
    # Halo rows are zeroed at the true image borders; left/right zero padding is
    # realised with two column shifts on per-tap accumulators.
    hi = pl.program_id(1)
    last = pl.num_programs(1) - 1

    xc = x_ref[0].astype(jnp.float32)                               # (th, w, c)
    c = xc.shape[-1]
    top = jnp.where(hi == 0, 0.0, top_ref[0, 0].astype(jnp.float32))       # (w, c)
    bot = jnp.where(hi == last, 0.0, bot_ref[0, 0].astype(jnp.float32))    # (w, c)
    xp = jnp.concatenate([top[None], xc, bot[None]], axis=0)        # (th+2, w, c)

    wt = w_ref[...].astype(jnp.float32)                             # (9, c)
    acc_l = jnp.zeros_like(xc)
    acc_c = jnp.zeros_like(xc)
    acc_r = jnp.zeros_like(xc)
    for dy in range(3):
        slab = xp[dy:dy + th]                                       # (th, w, c)
        acc_l = acc_l + slab * wt[dy * 3 + 0]
        acc_c = acc_c + slab * wt[dy * 3 + 1]
        acc_r = acc_r + slab * wt[dy * 3 + 2]

    zcol = jnp.zeros((th, 1, c), jnp.float32)
    acc = acc_c
    acc = acc + jnp.concatenate([zcol, acc_l[:, :w - 1, :]], axis=1)   # x[.., j-1]
    acc = acc + jnp.concatenate([acc_r[:, 1:, :], zcol], axis=1)       # x[.., j+1]
    o_ref[0] = (acc + b_ref[...].astype(jnp.float32)).astype(o_ref.dtype)


def _attn_scores_kernel(qkv_ref, temp_ref, p_ref, g_ref, sq_ref, sk_ref,
                        *, num_heads, ch):
    # Streams hw tiles of the (hw, 3c) qkv tensor, accumulating per head
    #   G  = q^T k                    (ch, ch)   — MXU
    #   sq = sum_hw q*q, sk = sum_hw k*k   (1, ch) — VPU/XLU (no extra matmuls)
    # and on the last tile produces the softmaxed channel-attention matrix P.
    ti = pl.program_id(1)

    @pl.when(ti == 0)
    def _():
        g_ref[...] = jnp.zeros_like(g_ref)
        sq_ref[...] = jnp.zeros_like(sq_ref)
        sk_ref[...] = jnp.zeros_like(sk_ref)

    c = num_heads * ch
    qkv = qkv_ref[0].astype(jnp.float32)                     # (hw_tile, 3c)
    dims = (((0,), (0,)), ((), ()))                          # contract over hw
    for hd in range(num_heads):
        q = qkv[:, hd * ch:(hd + 1) * ch]
        k = qkv[:, c + hd * ch:c + (hd + 1) * ch]
        g_ref[hd] += lax.dot_general(q, k, dims, preferred_element_type=jnp.float32)
        sq_ref[hd] += jnp.sum(q * q, axis=0, keepdims=True)
        sk_ref[hd] += jnp.sum(k * k, axis=0, keepdims=True)

    @pl.when(ti == pl.num_programs(1) - 1)
    def _():
        ii = lax.broadcasted_iota(jnp.int32, (ch, ch), 0)
        jj = lax.broadcasted_iota(jnp.int32, (ch, ch), 1)
        eye = (ii == jj).astype(jnp.float32)
        for hd in range(num_heads):
            inv_q = lax.rsqrt(jnp.maximum(sq_ref[hd], 1e-24))        # (1, ch)
            inv_k = lax.rsqrt(jnp.maximum(sk_ref[hd], 1e-24))        # (1, ch)
            # diag(inv_q) @ G scales row i of G by inv_q[i] (avoids a relayout).
            g_scaled = jnp.dot(eye * inv_q, g_ref[hd],
                               preferred_element_type=jnp.float32)
            logits = g_scaled * inv_k * temp_ref[hd]
            logits = logits - jnp.max(logits, axis=-1, keepdims=True)
            e = jnp.exp(logits)
            p = e * pl.reciprocal(jnp.sum(e, axis=-1, keepdims=True), approx=True)
            p_ref[0, hd] = p.astype(p_ref.dtype)


def _attn_apply_proj_kernel(qkv_ref, p_ref, w_ref, b_ref, res_ref, o_ref,
                            *, num_heads, ch):
    # Fused: out = residual + bias + sum_heads (v_head @ P_head^T) @ Wproj[head rows]
    c = num_heads * ch
    qkv = qkv_ref[0].astype(jnp.float32)                     # (hw_tile, 3c)
    w = w_ref[...].astype(jnp.float32)                       # (c, c)
    acc = res_ref[0].astype(jnp.float32) + b_ref[...]
    for hd in range(num_heads):
        v = qkv[:, 2 * c + hd * ch:2 * c + (hd + 1) * ch]    # (hw_tile, ch)
        p = p_ref[0, hd]                                     # (ch, ch)
        o_h = lax.dot_general(v, p, (((1,), (1,)), ((), ())),
                              preferred_element_type=jnp.float32)    # (hw_tile, ch)
        acc = acc + jnp.dot(o_h, w[hd * ch:(hd + 1) * ch, :],
                            preferred_element_type=jnp.float32)
    o_ref[0] = acc.astype(o_ref.dtype)


def _erf_approx(x):
    # Abramowitz & Stegun 7.1.26 rational approximation, |err| < 1.5e-7.
    # TODO(synk): exact erf (PyTorch default GELU) has no assumed Mosaic lowering.
    a1, a2, a3, a4, a5 = 0.254829592, -0.284496736, 1.421413741, -1.453152027, 1.061405429
    p = 0.3275911
    s = jnp.where(x >= 0, 1.0, -1.0)
    ax = jnp.abs(x)
    t = 1.0 / (1.0 + p * ax)
    poly = ((((a5 * t + a4) * t + a3) * t + a2) * t + a1) * t
    return s * (1.0 - poly * jnp.exp(-ax * ax))


def _gelu_ffn_out_kernel(y_ref, w_ref, b_ref, res_ref, o_ref, *, hid):
    # Fused: out = residual + bias + (gelu(y[:, :hid]) * y[:, hid:]) @ Wout
    y = y_ref[...].astype(jnp.float32)                       # (rows, 2*hid)
    x1 = y[:, :hid]
    x2 = y[:, hid:]
    g = 0.5 * x1 * (1.0 + _erf_approx(x1 * 0.7071067811865476)) * x2
    acc = res_ref[...].astype(jnp.float32) + b_ref[...]
    acc = acc + jnp.dot(g, w_ref[...].astype(jnp.float32),
                        preferred_element_type=jnp.float32)
    o_ref[...] = acc.astype(o_ref.dtype)


# ----------------------------------------------------------------------------
# pallas_call wrappers
# ----------------------------------------------------------------------------

def ln_matmul(x, ln_w, ln_b, w, b, *, row_tile=256):
    n, cin = x.shape
    cout = w.shape[1]
    rt = min(row_tile, n)
    return pl.pallas_call(
        _ln_matmul_kernel,
        out_shape=jax.ShapeDtypeStruct((n, cout), x.dtype),
        grid_spec=pltpu.PrefetchScalarGridSpec(
            num_scalar_prefetch=0, grid=(pl.cdiv(n, rt),),
            in_specs=[pl.BlockSpec((rt, cin), lambda i: (i, 0)),
                      pl.BlockSpec((1, cin), lambda i: (0, 0)),
                      pl.BlockSpec((1, cin), lambda i: (0, 0)),
                      pl.BlockSpec((cin, cout), lambda i: (0, 0)),
                      pl.BlockSpec((1, cout), lambda i: (0, 0))],
            out_specs=pl.BlockSpec((rt, cout), lambda i: (i, 0))),
        compiler_params=_PAR(1),
    )(x, ln_w.reshape(1, cin), ln_b.reshape(1, cin), w, b.reshape(1, cout))


def dwconv3x3(x_nhwc, w9c, bias, *, h_tile=None, vmem_budget=16 << 20):
    b, h, w, c = x_nhwc.shape
    row_bytes = w * c * x_nhwc.dtype.itemsize
    cap = h_tile if h_tile is not None else max(1, vmem_budget // (10 * row_bytes))
    th = _pick_tile(h, cap)
    kern = functools.partial(_dwconv3x3_kernel, th=th, w=w)
    return pl.pallas_call(
        kern,
        out_shape=jax.ShapeDtypeStruct((b, h, w, c), x_nhwc.dtype),
        grid_spec=pltpu.PrefetchScalarGridSpec(
            num_scalar_prefetch=0, grid=(b, h // th),
            in_specs=[
                # center row tile
                pl.BlockSpec((1, th, w, c), lambda i, j: (i, j, 0, 0)),
                # 1-row top halo (row j*th - 1, clamped; masked to 0 at j==0)
                pl.BlockSpec((1, 1, w, c),
                             lambda i, j: (i, jnp.maximum(j * th - 1, 0), 0, 0)),
                # 1-row bottom halo (row j*th + th, clamped; masked to 0 at last j)
                pl.BlockSpec((1, 1, w, c),
                             lambda i, j: (i, jnp.minimum(j * th + th, h - 1), 0, 0)),
                pl.BlockSpec((9, c), lambda i, j: (0, 0)),
                pl.BlockSpec((1, c), lambda i, j: (0, 0))],
            out_specs=pl.BlockSpec((1, th, w, c), lambda i, j: (i, j, 0, 0))),
        compiler_params=_PAR(2),
    )(x_nhwc, x_nhwc, x_nhwc, w9c, bias.reshape(1, c))


def attention_scores(qkv_flat, temp, num_heads, *, hw_tile=None, vmem_budget=2 << 20):
    b, hw, c3 = qkv_flat.shape
    c = c3 // 3
    ch = c // num_heads
    cap = hw_tile if hw_tile is not None else max(
        8, vmem_budget // (c3 * qkv_flat.dtype.itemsize))
    tile = _pick_tile(hw, cap)
    kern = functools.partial(_attn_scores_kernel, num_heads=num_heads, ch=ch)
    return pl.pallas_call(
        kern,
        out_shape=jax.ShapeDtypeStruct((b, num_heads, ch, ch), jnp.float32),
        grid_spec=pltpu.PrefetchScalarGridSpec(
            num_scalar_prefetch=0, grid=(b, hw // tile),
            in_specs=[pl.BlockSpec((1, tile, c3), lambda i, j: (i, j, 0)),
                      pl.BlockSpec(memory_space=pltpu.MemorySpace.SMEM)],
            out_specs=pl.BlockSpec((1, num_heads, ch, ch), lambda i, j: (i, 0, 0, 0)),
            scratch_shapes=[pltpu.VMEM((num_heads, ch, ch), jnp.float32),
                            pltpu.VMEM((num_heads, 1, ch), jnp.float32),
                            pltpu.VMEM((num_heads, 1, ch), jnp.float32)]),
        compiler_params=pltpu.CompilerParams(
            dimension_semantics=("parallel", "arbitrary")),
    )(qkv_flat, temp)


def attention_apply_proj(qkv_flat, p, w_proj, b_proj, res_flat, *, hw_tile=None,
                         vmem_budget=2 << 20):
    b, hw, c3 = qkv_flat.shape
    c = res_flat.shape[-1]
    num_heads, ch = p.shape[1], p.shape[2]
    cap = hw_tile if hw_tile is not None else max(
        8, vmem_budget // (c3 * qkv_flat.dtype.itemsize))
    tile = _pick_tile(hw, cap)
    kern = functools.partial(_attn_apply_proj_kernel, num_heads=num_heads, ch=ch)
    return pl.pallas_call(
        kern,
        out_shape=jax.ShapeDtypeStruct((b, hw, c), qkv_flat.dtype),
        grid_spec=pltpu.PrefetchScalarGridSpec(
            num_scalar_prefetch=0, grid=(b, hw // tile),
            in_specs=[pl.BlockSpec((1, tile, c3), lambda i, j: (i, j, 0)),
                      pl.BlockSpec((1, num_heads, ch, ch), lambda i, j: (i, 0, 0, 0)),
                      pl.BlockSpec((c, c), lambda i, j: (0, 0)),
                      pl.BlockSpec((1, c), lambda i, j: (0, 0)),
                      pl.BlockSpec((1, tile, c), lambda i, j: (i, j, 0))],
            out_specs=pl.BlockSpec((1, tile, c), lambda i, j: (i, j, 0))),
        compiler_params=_PAR(2),
    )(qkv_flat, p, w_proj, b_proj.reshape(1, c), res_flat)


def gelu_ffn_out(y, w_out, b_out, res, *, row_tile=256):
    n, hid2 = y.shape
    hid = hid2 // 2
    c = w_out.shape[1]
    rt = min(row_tile, n)
    kern = functools.partial(_gelu_ffn_out_kernel, hid=hid)
    return pl.pallas_call(
        kern,
        out_shape=jax.ShapeDtypeStruct((n, c), y.dtype),
        grid_spec=pltpu.PrefetchScalarGridSpec(
            num_scalar_prefetch=0, grid=(pl.cdiv(n, rt),),
            in_specs=[pl.BlockSpec((rt, hid2), lambda i: (i, 0)),
                      pl.BlockSpec((hid, c), lambda i: (0, 0)),
                      pl.BlockSpec((1, c), lambda i: (0, 0)),
                      pl.BlockSpec((rt, c), lambda i: (i, 0))],
            out_specs=pl.BlockSpec((rt, c), lambda i: (i, 0))),
        compiler_params=_PAR(1),
    )(y, w_out, b_out.reshape(1, c), res)


# ----------------------------------------------------------------------------
# TransformerBlock forward
# ----------------------------------------------------------------------------

def transformer_block(x_nchw, params, num_heads, *, row_tile=256, hw_tile=None,
                      dw_tile=None):
    b, c, h, w = x_nchw.shape
    hw = h * w

    x = jnp.transpose(x_nchw, (0, 2, 3, 1))                  # NHWC (layout only)
    xf = x.reshape(b * hw, c)

    # ---- x = x + proj(attn(dwconv(qkv(norm1(x))))) ----
    qkv = ln_matmul(xf, params["ln1_w"], params["ln1_b"],
                    params["qkv_w"], params["qkv_b"], row_tile=row_tile)
    qkv = dwconv3x3(qkv.reshape(b, h, w, 3 * c),
                    params["qkv_dw_w"], params["qkv_dw_b"], h_tile=dw_tile)
    qkv = qkv.reshape(b, hw, 3 * c)
    p = attention_scores(qkv, params["temp"], num_heads, hw_tile=hw_tile)
    x1 = attention_apply_proj(qkv, p, params["proj_w"], params["proj_b"],
                              x.reshape(b, hw, c), hw_tile=hw_tile)
    xf = x1.reshape(b * hw, c)
    # TODO(synk): attention_apply_proj and the following ln2+ffn_in matmul could be
    # fused into one kernel (saves one HBM read pass of the c-channel tensor).

    # ---- x = x + ffn_out(gelu(y1) * y2), [y1 y2] = dwconv(ffn_in(norm2(x))) ----
    y = ln_matmul(xf, params["ln2_w"], params["ln2_b"],
                  params["ffn_in_w"], params["ffn_in_b"], row_tile=row_tile)
    y = dwconv3x3(y.reshape(b, h, w, y.shape[-1]),
                  params["ffn_dw_w"], params["ffn_dw_b"], h_tile=dw_tile)
    y = y.reshape(b * hw, -1)
    xf = gelu_ffn_out(y, params["ffn_out_w"], params["ffn_out_b"], xf,
                      row_tile=row_tile)

    return jnp.transpose(xf.reshape(b, h, w, c), (0, 3, 1, 2))


# ----------------------------------------------------------------------------
# Deterministic parameter init (shapes follow the PyTorch module, bias=True,
# LayerNorm_type='WithBias')
# ----------------------------------------------------------------------------

def init_params(key, dim, num_heads, ffn_expansion_factor):
    hid = int(dim * ffn_expansion_factor)
    ks = jax.random.split(key, 12)

    def rnd(k, shape, scale=0.1):
        return scale * jax.random.normal(k, shape, jnp.float32)

    return dict(
        ln1_w=jnp.ones((dim,), jnp.float32), ln1_b=jnp.zeros((dim,), jnp.float32),
        ln2_w=jnp.ones((dim,), jnp.float32), ln2_b=jnp.zeros((dim,), jnp.float32),
        temp=jnp.ones((num_heads,), jnp.float32),
        qkv_w=rnd(ks[0], (dim, 3 * dim)), qkv_b=rnd(ks[1], (3 * dim,)),
        qkv_dw_w=rnd(ks[2], (9, 3 * dim)), qkv_dw_b=rnd(ks[3], (3 * dim,)),
        proj_w=rnd(ks[4], (dim, dim)), proj_b=rnd(ks[5], (dim,)),
        ffn_in_w=rnd(ks[6], (dim, 2 * hid)), ffn_in_b=rnd(ks[7], (2 * hid,)),
        ffn_dw_w=rnd(ks[8], (9, 2 * hid)), ffn_dw_b=rnd(ks[9], (2 * hid,)),
        ffn_out_w=rnd(ks[10], (hid, dim)), ffn_out_b=rnd(ks[11], (dim,)),
    )


# ----------------------------------------------------------------------------
# Pure-JAX reference (mirrors the PyTorch TransformerBlock, NCHW)
# ----------------------------------------------------------------------------

def reference_block(x, params, num_heads):
    b, c, h, w = x.shape

    def ln(t, wgt, bias):
        t3 = t.reshape(b, c, h * w).transpose(0, 2, 1)
        mu = t3.mean(-1, keepdims=True)
        var = ((t3 - mu) ** 2).mean(-1, keepdims=True)
        y = (t3 - mu) / jnp.sqrt(var + 1e-5) * wgt + bias
        return y.transpose(0, 2, 1).reshape(b, c, h, w)

    def conv1x1(t, wgt, bias):
        return jnp.einsum("bihw,io->bohw", t, wgt) + bias[None, :, None, None]

    def dw3x3(t, wgt, bias):
        tp = jnp.pad(t, ((0, 0), (0, 0), (1, 1), (1, 1)))
        acc = 0.0
        for dy in range(3):
            for dx in range(3):
                acc = acc + tp[:, :, dy:dy + h, dx:dx + w] * wgt[dy * 3 + dx][None, :, None, None]
        return acc + bias[None, :, None, None]

    ch = c // num_heads
    n1 = ln(x, params["ln1_w"], params["ln1_b"])
    qkv = dw3x3(conv1x1(n1, params["qkv_w"], params["qkv_b"]),
                params["qkv_dw_w"], params["qkv_dw_b"])
    q, k, v = jnp.split(qkv, 3, axis=1)
    rs = lambda t: t.reshape(b, num_heads, ch, h * w)
    q, k, v = rs(q), rs(k), rs(v)
    qn = q / jnp.maximum(jnp.linalg.norm(q, axis=-1, keepdims=True), 1e-12)
    kn = k / jnp.maximum(jnp.linalg.norm(k, axis=-1, keepdims=True), 1e-12)
    attn = jnp.einsum("bhcd,bhed->bhce", qn, kn) * params["temp"][None, :, None, None]
    attn = jax.nn.softmax(attn, axis=-1)
    out = jnp.einsum("bhce,bhed->bhcd", attn, v).reshape(b, c, h, w)
    x = x + conv1x1(out, params["proj_w"], params["proj_b"])

    n2 = ln(x, params["ln2_w"], params["ln2_b"])
    y = dw3x3(conv1x1(n2, params["ffn_in_w"], params["ffn_in_b"]),
              params["ffn_dw_w"], params["ffn_dw_b"])
    x1, x2 = jnp.split(y, 2, axis=1)
    g = jax.nn.gelu(x1, approximate=False) * x2
    x = x + conv1x1(g, params["ffn_out_w"], params["ffn_out_b"])
    return x


# ----------------------------------------------------------------------------

if __name__ == "__main__":
    key = jax.random.PRNGKey(0)
    kx, kp = jax.random.split(key)

    b, dim, h, w = 2, 8, 16, 16
    num_heads, ffn_expansion_factor = 2, 2.0

    x = jax.random.normal(kx, (b, dim, h, w), jnp.float32)
    params = init_params(kp, dim, num_heads, ffn_expansion_factor)
    ref = reference_block(x, params, num_heads)

    # default (large) tiles
    out = jax.block_until_ready(transformer_block(x, params, num_heads))
    assert out.shape == x.shape, (out.shape, x.shape)
    err = float(jnp.max(jnp.abs(out - ref)))
    assert jnp.allclose(out, ref, atol=2e-3, rtol=2e-3), f"max err (default tiles) {err}"

    # forced small tiles: exercises partial row-tile padding, the hw-streamed
    # attention accumulation and the dwconv halo blocks across multiple row tiles.
    out2 = jax.block_until_ready(
        transformer_block(x, params, num_heads, row_tile=96, hw_tile=64, dw_tile=4))
    err2 = float(jnp.max(jnp.abs(out2 - ref)))
    assert jnp.allclose(out2, ref, atol=2e-3, rtol=2e-3), f"max err (small tiles) {err2}"

    print("KERNEL_OK")
</pallas_src>

<mosaic_0001>
module attributes {stable_mosaic.version = 11 : i64} {
  func.func @_ln_matmul_kernel(%arg0: i32, %arg1: memref<256x8xf32, #tpu.memory_space<vmem>>, %arg2: memref<1x8xf32, #tpu.memory_space<vmem>>, %arg3: memref<1x8xf32, #tpu.memory_space<vmem>>, %arg4: memref<8x24xf32, #tpu.memory_space<vmem>>, %arg5: memref<1x24xf32, #tpu.memory_space<vmem>>, %arg6: memref<256x24xf32, #tpu.memory_space<vmem>>) attributes {dimension_semantics = [#tpu.dimension_semantics<parallel>], iteration_bounds = array<i64: 2>, scalar_prefetch = 0 : i64, scratch_operands = 0 : i64, tpu.core_type = #tpu.core_type<tc>, window_params = [{transform_indices = @transform_0, window_bounds = array<i64: 256, 8>}, {pipeline_mode = #tpu.pipeline_mode<synchronous>, transform_indices = @transform_1, window_bounds = array<i64: 1, 8>}, {pipeline_mode = #tpu.pipeline_mode<synchronous>, transform_indices = @transform_2, window_bounds = array<i64: 1, 8>}, {pipeline_mode = #tpu.pipeline_mode<synchronous>, transform_indices = @transform_3, window_bounds = array<i64: 8, 24>}, {pipeline_mode = #tpu.pipeline_mode<synchronous>, transform_indices = @transform_4, window_bounds = array<i64: 1, 24>}, {transform_indices = @transform_5, window_bounds = array<i64: 256, 24>}]} {
    %c0 = arith.constant 0 : index
    %c0_0 = arith.constant 0 : index
    %0 = vector.load %arg1[%c0, %c0_0] : memref<256x8xf32, #tpu.memory_space<vmem>>, vector<256x8xf32>
    %cst = arith.constant dense<0.000000e+00> : vector<256xf32>
    %1 = vector.multi_reduction <add>, %0, %cst [1] : vector<256x8xf32> to vector<256xf32>
    %2 = vector.shape_cast %1 : vector<256xf32> to vector<256x1xf32>
    %cst_1 = arith.constant 8.000000e+00 : f32
    %3 = vector.broadcast %cst_1 : f32 to vector<256x1xf32>
    %4 = arith.divf %2, %3 : vector<256x1xf32>
    %5 = vector.broadcast %4 : vector<256x1xf32> to vector<256x8xf32>
    %6 = arith.subf %0, %5 : vector<256x8xf32>
    %7 = arith.mulf %6, %6 : vector<256x8xf32>
    %cst_2 = arith.constant dense<0.000000e+00> : vector<256xf32>
    %8 = vector.multi_reduction <add>, %7, %cst_2 [1] : vector<256x8xf32> to vector<256xf32>
    %9 = vector.shape_cast %8 : vector<256xf32> to vector<256x1xf32>
    %cst_3 = arith.constant 8.000000e+00 : f32
    %10 = vector.broadcast %cst_3 : f32 to vector<256x1xf32>
    %11 = arith.divf %9, %10 : vector<256x1xf32>
    %12 = vector.broadcast %4 : vector<256x1xf32> to vector<256x8xf32>
    %13 = arith.subf %0, %12 : vector<256x8xf32>
    %cst_4 = arith.constant 9.99999974E-6 : f32
    %14 = vector.broadcast %cst_4 : f32 to vector<256x1xf32>
    %15 = arith.addf %11, %14 : vector<256x1xf32>
    %16 = math.rsqrt %15 : vector<256x1xf32>
    %17 = vector.broadcast %16 : vector<256x1xf32> to vector<256x8xf32>
    %18 = arith.mulf %13, %17 : vector<256x8xf32>
    %c0_5 = arith.constant 0 : index
    %c0_6 = arith.constant 0 : index
    %19 = vector.load %arg2[%c0_5, %c0_6] : memref<1x8xf32, #tpu.memory_space<vmem>>, vector<1x8xf32>
    %20 = vector.broadcast %19 : vector<1x8xf32> to vector<256x8xf32>
    %21 = arith.mulf %18, %20 : vector<256x8xf32>
    %c0_7 = arith.constant 0 : index
    %c0_8 = arith.constant 0 : index
    %22 = vector.load %arg3[%c0_7, %c0_8] : memref<1x8xf32, #tpu.memory_space<vmem>>, vector<1x8xf32>
    %23 = vector.broadcast %22 : vector<1x8xf32> to vector<256x8xf32>
    %24 = arith.addf %21, %23 : vector<256x8xf32>
    %c0_9 = arith.constant 0 : index
    %c0_10 = arith.constant 0 : index
    %25 = vector.load %arg4[%c0_9, %c0_10] : memref<8x24xf32, #tpu.memory_space<vmem>>, vector<8x24xf32>
    %cst_11 = arith.constant dense<0.000000e+00> : vector<256x24xf32>
    %26 = tpu.matmul %24, %25, %cst_11 {dimension_numbers = #tpu.dot_dimension_numbers<[1], [0], [0], [1], [0, 0, 1, 1], [], []>} : vector<256x8xf32>, vector<8x24xf32>, vector<256x24xf32> -> vector<256x24xf32>
    %c0_12 = arith.constant 0 : index
    %c0_13 = arith.constant 0 : index
    %27 = vector.load %arg5[%c0_12, %c0_13] : memref<1x24xf32, #tpu.memory_space<vmem>>, vector<1x24xf32>
    %28 = vector.broadcast %27 : vector<1x24xf32> to vector<256x24xf32>
    %29 = arith.addf %26, %28 : vector<256x24xf32>
    %c0_14 = arith.constant 0 : index
    %c0_15 = arith.constant 0 : index
    %30 = vector.load %arg6[%c0_14, %c0_15] : memref<256x24xf32, #tpu.memory_space<vmem>>, vector<256x24xf32>
    tpu.vector_store %arg6[%c0_14, %c0_15], %29 {strides = array<i32>} : memref<256x24xf32, #tpu.memory_space<vmem>>, vector<256x24xf32>,
    return
  }
  func.func @transform_0(%arg0: i32) -> (i32, i32) {
    %c0_i32 = arith.constant 0 : i32
    %c0_i32_0 = arith.constant 0 : i32
    return %arg0, %c0_i32 : i32, i32
  }
  func.func @transform_1(%arg0: i32) -> (i32, i32) {
    %c0_i32 = arith.constant 0 : i32
    %c0_i32_0 = arith.constant 0 : i32
    %c0_i32_1 = arith.constant 0 : i32
    return %c0_i32, %c0_i32_0 : i32, i32
  }
  func.func @transform_2(%arg0: i32) -> (i32, i32) {
    %c0_i32 = arith.constant 0 : i32
    %c0_i32_0 = arith.constant 0 : i32
    %c0_i32_1 = arith.constant 0 : i32
    return %c0_i32, %c0_i32_0 : i32, i32
  }
  func.func @transform_3(%arg0: i32) -> (i32, i32) {
    %c0_i32 = arith.constant 0 : i32
    %c0_i32_0 = arith.constant 0 : i32
    %c0_i32_1 = arith.constant 0 : i32
    return %c0_i32, %c0_i32_0 : i32, i32
  }
  func.func @transform_4(%arg0: i32) -> (i32, i32) {
    %c0_i32 = arith.constant 0 : i32
    %c0_i32_0 = arith.constant 0 : i32
    %c0_i32_1 = arith.constant 0 : i32
    return %c0_i32, %c0_i32_0 : i32, i32
  }
  func.func @transform_5(%arg0: i32) -> (i32, i32) {
    %c0_i32 = arith.constant 0 : i32
    %c0_i32_0 = arith.constant 0 : i32
    return %arg0, %c0_i32 : i32, i32
  }
}

</mosaic_0001>

<llo_original>
// kernel: tpu_custom_call.1
$region0: #{tpu_custom_call.1}
  #allocation0 [shape = 'u32[]', space=smem, size = 0x4, offset = 0x4, fixed_abs, tag = 'smem constant byte address 0x4 - core index']
  #allocation1 [shape = 'u32[72,128]{1,0:T(1,128)}', space=vmem, size = 0x9000, scoped, tag = 'internal scratch']
  %s0 = inlined_call_operand.vmem [shape: f32[512,8], index: 0, kind: input, shape index: {}]
  %s1 = inlined_call_operand.vmem [shape: f32[1,8], index: 1, kind: input, shape index: {}]
  %s2 = inlined_call_operand.vmem [shape: f32[1,8], index: 2, kind: input, shape index: {}]
  %s3 = inlined_call_operand.vmem [shape: f32[8,24], index: 3, kind: input, shape index: {}]
  %s4 = inlined_call_operand.vmem [shape: f32[1,24], index: 4, kind: input, shape index: {}]
  %s5 = inlined_call_operand.vmem [shape: f32[512,24], index: 5, kind: output, shape index: {}]
  %s6 = sld [smem:[#allocation0]]
  $region53: #{tpu_custom_call.1} parent=0
    _
  %s8 = ssub.s32 1, %s6
  %s9 = scalar_select 0, %s8, %s6
  loop: start=0, step=1, limit=4
  $region2: #{tpu_custom_call.1} parent=0 // loop_pre_header
    _
  $region3: #{tpu_custom_call.1} parent=0 // loop_header
    %s11 = sphi 0, %s15
    %p12 = scmp.ge.s32.totalorder %s11, 4
    %s21 = sphi 0, %s23
    %s24 = sphi 0, %s21
    %s25 = sphi 0, %s24
    %s41 = sphi 0, %s25
    %s45 = sphi 0, %s45
    %s47 = sphi 0, %s45
    %s48 = sphi 0, %s47
    %s62 = sphi 0, %s48
    %s66 = sphi 0, %s66
    %s68 = sphi 0, %s66
    %s69 = sphi 0, %s68
    %s83 = sphi 0, %s69
    %s87 = sphi 0, %s87
    %s89 = sphi 0, %s87
    %s90 = sphi 0, %s89
    %s104 = sphi 0, %s90
    %s108 = sphi 0, %s108
    %s110 = sphi 0, %s108
    %s111 = sphi 0, %s110
    %s125 = sphi 0, %s111
    %s131 = sphi 0, %s133
    %s134 = sphi 0, %s131
    %s135 = sphi 0, %s134
    %s151 = sphi 0, %s135
  $region4: #{tpu_custom_call.1} parent=0 // loop_header_branch
    %14 = sbr.rel (%p12) target = $region8
  $region5: #{tpu_custom_call.1} parent=0 // loop_body
    %s16 = ssub.s32 %s11, 1
    %s17 = ssub.s32 %s11, 2
    %s18 = sadd.s32 %s11, 1
    %s19 = ssub.s32 %s11, %s18
    %p20 = scmp.eq.s32.totalorder %s19, 0
    %s22 = sadd.s32 %s21, 1
    %s23 = scalar_select %p20, %s21, %s22
    %p26 = pneg %p20
    %p27 = scmp.eq.s32.totalorder %s11, 1
    %p28 = por %p26, %p27
    %p29 = scmp.ne.s32.totalorder %s21, %s24
    %p30 = scmp.eq.s32.totalorder %s11, 0
    %p31 = por %p29, %p30
    %p32 = scmp.ne.s32.totalorder %s21, %s24
    %p33 = scmp.eq.s32.totalorder %s16, 1
    %p34 = por %p32, %p33
    %p35 = scmp.ne.s32.totalorder %s24, %s25
    %p36 = scmp.eq.s32.totalorder %s16, 0
    %p37 = por %p35, %p36
    %p38 = scmp.ne.s32.totalorder %s24, %s25
    %p39 = scmp.eq.s32.totalorder %s17, 1
    %p40 = por %p38, %p39
    %p42 = scmp.ne.s32.totalorder %s25, %s41
    %p43 = scmp.eq.s32.totalorder %s17, 0
    %p44 = por %p42, %p43
    %s46 = sadd.s32 %s45, 1
    %p49 = scmp.eq.s32.totalorder %s11, 1
    %p50 = scmp.ne.s32.totalorder %s45, %s47
    %p51 = scmp.eq.s32.totalorder %s11, 0
    %p52 = por %p50, %p51
    %p53 = scmp.ne.s32.totalorder %s45, %s47
    %p54 = scmp.eq.s32.totalorder %s16, 1
    %p55 = por %p53, %p54
    %p56 = scmp.ne.s32.totalorder %s47, %s48
    %p57 = scmp.eq.s32.totalorder %s16, 0
    %p58 = por %p56, %p57
    %p59 = scmp.ne.s32.totalorder %s47, %s48
    %p60 = scmp.eq.s32.totalorder %s17, 1
    %p61 = por %p59, %p60
    %p63 = scmp.ne.s32.totalorder %s48, %s62
    %p64 = scmp.eq.s32.totalorder %s17, 0
    %p65 = por %p63, %p64
    %s67 = sadd.s32 %s66, 1
    %p70 = scmp.eq.s32.totalorder %s11, 1
    %p71 = scmp.ne.s32.totalorder %s66, %s68
    %p72 = scmp.eq.s32.totalorder %s11, 0
    %p73 = por %p71, %p72
    %p74 = scmp.ne.s32.totalorder %s66, %s68
    %p75 = scmp.eq.s32.totalorder %s16, 1
    %p76 = por %p74, %p75
    %p77 = scmp.ne.s32.totalorder %s68, %s69
    %p78 = scmp.eq.s32.totalorder %s16, 0
    %p79 = por %p77, %p78
    %p80 = scmp.ne.s32.totalorder %s68, %s69
    %p81 = scmp.eq.s32.totalorder %s17, 1
    %p82 = por %p80, %p81
    %p84 = scmp.ne.s32.totalorder %s69, %s83
    %p85 = scmp.eq.s32.totalorder %s17, 0
    %p86 = por %p84, %p85
    %s88 = sadd.s32 %s87, 1
    %p91 = scmp.eq.s32.totalorder %s11, 1
    %p92 = scmp.ne.s32.totalorder %s87, %s89
    %p93 = scmp.eq.s32.totalorder %s11, 0
    %p94 = por %p92, %p93
    %p95 = scmp.ne.s32.totalorder %s87, %s89
    %p96 = scmp.eq.s32.totalorder %s16, 1
    %p97 = por %p95, %p96
    %p98 = scmp.ne.s32.totalorder %s89, %s90
    %p99 = scmp.eq.s32.totalorder %s16, 0
    %p100 = por %p98, %p99
    %p101 = scmp.ne.s32.totalorder %s89, %s90
    %p102 = scmp.eq.s32.totalorder %s17, 1
    %p103 = por %p101, %p102
    %p105 = scmp.ne.s32.totalorder %s90, %s104
    %p106 = scmp.eq.s32.totalorder %s17, 0
    %p107 = por %p105, %p106
    %s109 = sadd.s32 %s108, 1
    %p112 = scmp.eq.s32.totalorder %s11, 1
    %p113 = scmp.ne.s32.totalorder %s108, %s110
    %p114 = scmp.eq.s32.totalorder %s11, 0
    %p115 = por %p113, %p114
    %p116 = scmp.ne.s32.totalorder %s108, %s110
    %p117 = scmp.eq.s32.totalorder %s16, 1
    %p118 = por %p116, %p117
    %p119 = scmp.ne.s32.totalorder %s110, %s111
    %p120 = scmp.eq.s32.totalorder %s16, 0
    %p121 = por %p119, %p120
    %p122 = scmp.ne.s32.totalorder %s110, %s111
    %p123 = scmp.eq.s32.totalorder %s17, 1
    %p124 = por %p122, %p123
    %p126 = scmp.ne.s32.totalorder %s111, %s125
    %p127 = scmp.eq.s32.totalorder %s17, 0
    %p128 = por %p126, %p127
    %s129 = ssub.s32 %s11, %s18
    %p130 = scmp.eq.s32.totalorder %s129, 0
    %s132 = sadd.s32 %s131, 1
    %s133 = scalar_select %p130, %s131, %s132
    %p136 = pneg %p130
    %p137 = scmp.eq.s32.totalorder %s11, 1
    %p138 = por %p136, %p137
    %p139 = scmp.ne.s32.totalorder %s131, %s134
    %p140 = scmp.eq.s32.totalorder %s11, 0
    %p141 = por %p139, %p140
    %p142 = scmp.ne.s32.totalorder %s131, %s134
    %p143 = scmp.eq.s32.totalorder %s16, 1
    %p144 = por %p142, %p143
    %p145 = scmp.ne.s32.totalorder %s134, %s135
    %p146 = scmp.eq.s32.totalorder %s16, 0
    %p147 = por %p145, %p146
    %p148 = scmp.ne.s32.totalorder %s134, %s135
    %p149 = scmp.eq.s32.totalorder %s17, 1
    %p150 = por %p148, %p149
    %p152 = scmp.ne.s32.totalorder %s135, %s151
    %p153 = scmp.eq.s32.totalorder %s17, 0
    %p154 = por %p152, %p153
    %p155 = scmp.le.s32.totalorder 1, %s11
    %p156 = scmp.lt.s32.totalorder %s11, 3
    %p157 = pnand %p155, %p156
    %p158 = pneg %p157
    // Predicated region
    $region9: #{tpu_custom_call.1} parent=5 // pred_check
      _
    $region10: #{tpu_custom_call.1} parent=5 // pred_check_branch
      %160 = sbr.rel (%p157) target = $region12
    $region11: #{tpu_custom_call.1} parent=5 // pred_region
      %s161 = ssub.s32 %s11, 1
      // Predicated region
      $region13: #{tpu_custom_call.1} parent=11 // pred_check
        %p162 = pneg %p58
      $region14: #{tpu_custom_call.1} parent=11 // pred_check_branch
        %164 = sbr.rel (%p162) target = $region16
      $region15: #{tpu_custom_call.1} parent=11 // pred_region
        _
      $region16: #{tpu_custom_call.1} parent=11 // pred_fallthru
        _
      // Predicated region
      $region17: #{tpu_custom_call.1} parent=11 // pred_check
        %p165 = pneg %p79
      $region18: #{tpu_custom_call.1} parent=11 // pred_check_branch
        %167 = sbr.rel (%p165) target = $region20
      $region19: #{tpu_custom_call.1} parent=11 // pred_region
        _
      $region20: #{tpu_custom_call.1} parent=11 // pred_fallthru
        _
      // Predicated region
      $region21: #{tpu_custom_call.1} parent=11 // pred_check
        %p168 = pneg %p100
      $region22: #{tpu_custom_call.1} parent=11 // pred_check_branch
        %170 = sbr.rel (%p168) target = $region24
      $region23: #{tpu_custom_call.1} parent=11 // pred_region
        _
      $region24: #{tpu_custom_call.1} parent=11 // pred_fallthru
        _
      // Predicated region
      $region25: #{tpu_custom_call.1} parent=11 // pred_check
        %p171 = pneg %p121
      $region26: #{tpu_custom_call.1} parent=11 // pred_check_branch
        %173 = sbr.rel (%p171) target = $region28
      $region27: #{tpu_custom_call.1} parent=11 // pred_region
        _
      $region28: #{tpu_custom_call.1} parent=11 // pred_fallthru
        _
    $region12: #{tpu_custom_call.1} parent=5 // pred_fallthru
      _
    %p174 = scmp.lt.s32.totalorder %s11, 2
    // Predicated region
    $region29: #{tpu_custom_call.1} parent=5 // pred_check
      %p175 = pneg %p174
    $region30: #{tpu_custom_call.1} parent=5 // pred_check_branch
      %177 = sbr.rel (%p175) target = $region32
    $region31: #{tpu_custom_call.1} parent=5 // pred_region
      // Predicated region
      $region33: #{tpu_custom_call.1} parent=31 // pred_check
        %p178 = pneg %p31
      $region34: #{tpu_custom_call.1} parent=31 // pred_check_branch
        %180 = sbr.rel (%p178) target = $region36
      $region35: #{tpu_custom_call.1} parent=31 // pred_region
        %s181 = smul.u32 32, %s11
        %p182 = scmp.lt.s32.totalorder %s181, 63
        %s183 = scalar_select %p182, %s181, 63
        %s184 = smul.addr %s183, 8
        %s185 = scalar_lea.vmem %s0, %s184
        %s186 = smul.u32 32, %s11
      $region36: #{tpu_custom_call.1} parent=31 // pred_fallthru
        _
    $region32: #{tpu_custom_call.1} parent=5 // pred_fallthru
      _
    %p187 = scmp.le.s32.totalorder 1, %s11
    %p188 = scmp.lt.s32.totalorder %s11, 3
    %p189 = pnand %p187, %p188
    %p190 = pneg %p189
    // Predicated region
    $region37: #{tpu_custom_call.1} parent=5 // pred_check
      _
    $region38: #{tpu_custom_call.1} parent=5 // pred_check_branch
      %192 = sbr.rel (%p189) target = $region40
    $region39: #{tpu_custom_call.1} parent=5 // pred_region
      %s193 = ssub.s32 %s11, 1
      %s194 = smul.u32 32, %s16
      %p195 = scmp.lt.s32.totalorder %s194, 63
      %s196 = scalar_select %p195, %s194, 63
      %s197 = smul.addr %s196, 8
      %s198 = scalar_lea.vmem %s0, %s197
      %p199 = pneg %p37
      %p200 = pneg %p34
      %p201 = pneg %p58
      %p202 = pneg %p55
      %p203 = pneg %p79
      %p204 = pneg %p76
      %p205 = pneg %p100
      %p206 = pneg %p97
      %p207 = pneg %p121
      %p208 = pneg %p118
      %p209 = pneg %p147
      %p210 = pneg %p144
      %s211 = smul.u32 32, %s16
      %p212 = scmp.lt.s32.totalorder %s211, 63
      %s213 = scalar_select %p212, %s211, 63
      %s214 = smul.addr %s213, 8
      %s215 = scalar_lea.vmem %s5, %s214
      %s216 = smul.u32 32, %s16
      %p217 = scmp.lt.s32.totalorder %s216, 63
      %s218 = scalar_select %p217, %s216, 63
      %s219 = smul.addr %s218, 8
      %s220 = scalar_lea.vmem %s0, %s219
      %s221 = smul.u32 32, %s16
      %s222 = smul.u32 32, %s16
      %p223 = scmp.lt.s32.totalorder %s222, 63
      %s224 = scalar_select %p223, %s222, 63
      %s225 = smul.addr %s224, 8
      %s226 = scalar_lea.vmem %s5, %s225
      %s227 = smul.u32 32, %s16
      %v228 = vld [vmem:[%s220] sm:$0xff]
      %v229 = vld [vmem:[%s220 + $0x8] sm:$0xff]
      %v230 = vld [vmem:[%s220 + $0x10] sm:$0xff]
      %v231 = vld [vmem:[%s220 + $0x18] sm:$0xff]
      %v232 = vld [vmem:[%s220 + $0x20] sm:$0xff]
      %v233 = vld [vmem:[%s220 + $0x28] sm:$0xff]
      %v234 = vld [vmem:[%s220 + $0x30] sm:$0xff]
      %v235 = vld [vmem:[%s220 + $0x38] sm:$0xff]
      %v236 = vld [vmem:[%s220 + $0x40] sm:$0xff]
      %v237 = vld [vmem:[%s220 + $0x48] sm:$0xff]
      %v238 = vld [vmem:[%s220 + $0x50] sm:$0xff]
      %v239 = vld [vmem:[%s220 + $0x58] sm:$0xff]
      %v240 = vld [vmem:[%s220 + $0x60] sm:$0xff]
      %v241 = vld [vmem:[%s220 + $0x68] sm:$0xff]
      %v242 = vld [vmem:[%s220 + $0x70] sm:$0xff]
      %v243 = vld [vmem:[%s220 + $0x78] sm:$0xff]
      %v244 = vld [vmem:[%s220 + $0x80] sm:$0xff]
      %v245 = vld [vmem:[%s220 + $0x88] sm:$0xff]
      %v246 = vld [vmem:[%s220 + $0x90] sm:$0xff]
      %v247 = vld [vmem:[%s220 + $0x98] sm:$0xff]
      %v248 = vld [vmem:[%s220 + $0xa0] sm:$0xff]
      %v249 = vld [vmem:[%s220 + $0xa8] sm:$0xff]
      %v250 = vld [vmem:[%s220 + $0xb0] sm:$0xff]
      %v251 = vld [vmem:[%s220 + $0xb8] sm:$0xff]
      %v252 = vld [vmem:[%s220 + $0xc0] sm:$0xff]
      %v253 = vld [vmem:[%s220 + $0xc8] sm:$0xff]
      %v254 = vld [vmem:[%s220 + $0xd0] sm:$0xff]
      %v255 = vld [vmem:[%s220 + $0xd8] sm:$0xff]
      %v256 = vld [vmem:[%s220 + $0xe0] sm:$0xff]
      %v257 = vld [vmem:[%s220 + $0xe8] sm:$0xff]
      %v258 = vld [vmem:[%s220 + $0xf0] sm:$0xff]
      %v259 = vld [vmem:[%s220 + $0xf8] sm:$0xff]
      %vm260 = vcmask 64512
      %v261 = vsel %vm260, %v228, 0.0
      %262 = vadd.xlane.f32.xlu0 %v261
      %v263 = vpop.xlane.xlu0 %262
      %v264 = vsel %vm260, %v229, 0.0
      %265 = vadd.xlane.f32.xlu0 %v264
      %v266 = vpop.xlane.xlu0 %265
      %v267 = vsel %vm260, %v230, 0.0
      %268 = vadd.xlane.f32.xlu0 %v267
      %v269 = vpop.xlane.xlu0 %268
      %v270 = vsel %vm260, %v231, 0.0
      %271 = vadd.xlane.f32.xlu0 %v270
      %v272 = vpop.xlane.xlu0 %271
      %v273 = vsel %vm260, %v232, 0.0
      %274 = vadd.xlane.f32.xlu0 %v273
      %v275 = vpop.xlane.xlu0 %274
      %v276 = vsel %vm260, %v233, 0.0
      %277 = vadd.xlane.f32.xlu0 %v276
      %v278 = vpop.xlane.xlu0 %277
      %v279 = vsel %vm260, %v234, 0.0
      %280 = vadd.xlane.f32.xlu0 %v279
      %v281 = vpop.xlane.xlu0 %280
      %v282 = vsel %vm260, %v235, 0.0
      %283 = vadd.xlane.f32.xlu0 %v282
      %v284 = vpop.xlane.xlu0 %283
      %v285 = vsel %vm260, %v236, 0.0
      %286 = vadd.xlane.f32.xlu0 %v285
      %v287 = vpop.xlane.xlu0 %286
      %v288 = vsel %vm260, %v237, 0.0
      %289 = vadd.xlane.f32.xlu0 %v288
      %v290 = vpop.xlane.xlu0 %289
      %v291 = vsel %vm260, %v238, 0.0
      %292 = vadd.xlane.f32.xlu0 %v291
      %v293 = vpop.xlane.xlu0 %292
      %v294 = vsel %vm260, %v239, 0.0
      %295 = vadd.xlane.f32.xlu0 %v294
      %v296 = vpop.xlane.xlu0 %295
      %v297 = vsel %vm260, %v240, 0.0
      %298 = vadd.xlane.f32.xlu0 %v297
      %v299 = vpop.xlane.xlu0 %298
      %v300 = vsel %vm260, %v241, 0.0
      %301 = vadd.xlane.f32.xlu0 %v300
      %v302 = vpop.xlane.xlu0 %301
      %v303 = vsel %vm260, %v242, 0.0
      %304 = vadd.xlane.f32.xlu0 %v303
      %v305 = vpop.xlane.xlu0 %304
      %v306 = vsel %vm260, %v243, 0.0
      %307 = vadd.xlane.f32.xlu0 %v306
      %v308 = vpop.xlane.xlu0 %307
      %v309 = vsel %vm260, %v244, 0.0
      %310 = vadd.xlane.f32.xlu0 %v309
      %v311 = vpop.xlane.xlu0 %310
      %v312 = vsel %vm260, %v245, 0.0
      %313 = vadd.xlane.f32.xlu0 %v312
      %v314 = vpop.xlane.xlu0 %313
      %v315 = vsel %vm260, %v246, 0.0
      %316 = vadd.xlane.f32.xlu0 %v315
      %v317 = vpop.xlane.xlu0 %316
      %v318 = vsel %vm260, %v247, 0.0
      %319 = vadd.xlane.f32.xlu0 %v318
      %v320 = vpop.xlane.xlu0 %319
      %v321 = vsel %vm260, %v248, 0.0
      %322 = vadd.xlane.f32.xlu0 %v321
      %v323 = vpop.xlane.xlu0 %322
      %v324 = vsel %vm260, %v249, 0.0
      %325 = vadd.xlane.f32.xlu0 %v324
      %v326 = vpop.xlane.xlu0 %325
      %v327 = vsel %vm260, %v250, 0.0
      %328 = vadd.xlane.f32.xlu0 %v327
      %v329 = vpop.xlane.xlu0 %328
      %v330 = vsel %vm260, %v251, 0.0
      %331 = vadd.xlane.f32.xlu0 %v330
      %v332 = vpop.xlane.xlu0 %331
      %v333 = vsel %vm260, %v252, 0.0
      %334 = vadd.xlane.f32.xlu0 %v333
      %v335 = vpop.xlane.xlu0 %334
      %v336 = vsel %vm260, %v253, 0.0
      %337 = vadd.xlane.f32.xlu0 %v336
      %v338 = vpop.xlane.xlu0 %337
      %v339 = vsel %vm260, %v254, 0.0
      %340 = vadd.xlane.f32.xlu0 %v339
      %v341 = vpop.xlane.xlu0 %340
      %v342 = vsel %vm260, %v255, 0.0
      %343 = vadd.xlane.f32.xlu0 %v342
      %v344 = vpop.xlane.xlu0 %343
      %v345 = vsel %vm260, %v256, 0.0
      %346 = vadd.xlane.f32.xlu0 %v345
      %v347 = vpop.xlane.xlu0 %346
      %v348 = vsel %vm260, %v257, 0.0
      %349 = vadd.xlane.f32.xlu0 %v348
      %v350 = vpop.xlane.xlu0 %349
      %v351 = vsel %vm260, %v258, 0.0
      %352 = vadd.xlane.f32.xlu0 %v351
      %v353 = vpop.xlane.xlu0 %352
      %v354 = vsel %vm260, %v259, 0.0
      %355 = vadd.xlane.f32.xlu0 %v354
      %v356 = vpop.xlane.xlu0 %355
      %v357 = vrcp.pop 8.0
      %v358 = vmul.f32 8.0, %v357
      %v359 = vsub.f32 1.0, %v358
      %v360 = vmul.f32 %v357, %v359
      %v361 = vadd.f32 %v357, %v360
      %vm362 = vweird.f32 %v357
      %v363 = vsel %vm362, %v357, %v361
      %v364 = vmul.f32 %v263, %v363
      %v365 = vmul.f32 %v266, %v363
      %v366 = vmul.f32 %v269, %v363
      %v367 = vmul.f32 %v272, %v363
      %v368 = vmul.f32 %v275, %v363
      %v369 = vmul.f32 %v278, %v363
      %v370 = vmul.f32 %v281, %v363
      %v371 = vmul.f32 %v284, %v363
      %v372 = vmul.f32 %v287, %v363
      %v373 = vmul.f32 %v290, %v363
      %v374 = vmul.f32 %v293, %v363
      %v375 = vmul.f32 %v296, %v363
      %v376 = vmul.f32 %v299, %v363
      %v377 = vmul.f32 %v302, %v363
      %v378 = vmul.f32 %v305, %v363
      %v379 = vmul.f32 %v308, %v363
      %v380 = vmul.f32 %v311, %v363
      %v381 = vmul.f32 %v314, %v363
      %v382 = vmul.f32 %v317, %v363
      %v383 = vmul.f32 %v320, %v363
      %v384 = vmul.f32 %v323, %v363
      %v385 = vmul.f32 %v326, %v363
      %v386 = vmul.f32 %v329, %v363
      %v387 = vmul.f32 %v332, %v363
      %v388 = vmul.f32 %v335, %v363
      %v389 = vmul.f32 %v338, %v363
      %v390 = vmul.f32 %v341, %v363
      %v391 = vmul.f32 %v344, %v363
      %v392 = vmul.f32 %v347, %v363
      %v393 = vmul.f32 %v350, %v363
      %v394 = vmul.f32 %v353, %v363
      %v395 = vmul.f32 %v356, %v363
      %v396 = vsub.f32 %v228, %v364
      %v397 = vsub.f32 %v229, %v365
      %v398 = vsub.f32 %v230, %v366
      %v399 = vsub.f32 %v231, %v367
      %v400 = vsub.f32 %v232, %v368
      %v401 = vsub.f32 %v233, %v369
      %v402 = vsub.f32 %v234, %v370
      %v403 = vsub.f32 %v235, %v371
      %v404 = vsub.f32 %v236, %v372
      %v405 = vsub.f32 %v237, %v373
      %v406 = vsub.f32 %v238, %v374
      %v407 = vsub.f32 %v239, %v375
      %v408 = vsub.f32 %v240, %v376
      %v409 = vsub.f32 %v241, %v377
      %v410 = vsub.f32 %v242, %v378
      %v411 = vsub.f32 %v243, %v379
      %v412 = vsub.f32 %v244, %v380
      %v413 = vsub.f32 %v245, %v381
      %v414 = vsub.f32 %v246, %v382
      %v415 = vsub.f32 %v247, %v383
      %v416 = vsub.f32 %v248, %v384
      %v417 = vsub.f32 %v249, %v385
      %v418 = vsub.f32 %v250, %v386
      %v419 = vsub.f32 %v251, %v387
      %v420 = vsub.f32 %v252, %v388
      %v421 = vsub.f32 %v253, %v389
      %v422 = vsub.f32 %v254, %v390
      %v423 = vsub.f32 %v255, %v391
      %v424 = vsub.f32 %v256, %v392
      %v425 = vsub.f32 %v257, %v393
      %v426 = vsub.f32 %v258, %v394
      %v427 = vsub.f32 %v259, %v395
      %v428 = vmul.f32 %v396, %v396
      %v429 = vmul.f32 %v397, %v397
      %v430 = vmul.f32 %v398, %v398
      %v431 = vmul.f32 %v399, %v399
      %v432 = vmul.f32 %v400, %v400
      %v433 = vmul.f32 %v401, %v401
      %v434 = vmul.f32 %v402, %v402
      %v435 = vmul.f32 %v403, %v403
      %v436 = vmul.f32 %v404, %v404
      %v437 = vmul.f32 %v405, %v405
      %v438 = vmul.f32 %v406, %v406
      %v439 = vmul.f32 %v407, %v407
      %v440 = vmul.f32 %v408, %v408
      %v441 = vmul.f32 %v409, %v409
      %v442 = vmul.f32 %v410, %v410
      %v443 = vmul.f32 %v411, %v411
      %v444 = vmul.f32 %v412, %v412
      %v445 = vmul.f32 %v413, %v413
      %v446 = vmul.f32 %v414, %v414
      %v447 = vmul.f32 %v415, %v415
      %v448 = vmul.f32 %v416, %v416
      %v449 = vmul.f32 %v417, %v417
      %v450 = vmul.f32 %v418, %v418
      %v451 = vmul.f32 %v419, %v419
      %v452 = vmul.f32 %v420, %v420
      %v453 = vmul.f32 %v421, %v421
      %v454 = vmul.f32 %v422, %v422
      %v455 = vmul.f32 %v423, %v423
      %v456 = vmul.f32 %v424, %v424
      %v457 = vmul.f32 %v425, %v425
      %v458 = vmul.f32 %v426, %v426
      %v459 = vmul.f32 %v427, %v427
      %v460 = vsel %vm260, %v428, 0.0
      %461 = vadd.xlane.f32.xlu0 %v460
      %v462 = vpop.xlane.xlu0 %461
      %v463 = vsel %vm260, %v429, 0.0
      %464 = vadd.xlane.f32.xlu0 %v463
      %v465 = vpop.xlane.xlu0 %464
      %v466 = vsel %vm260, %v430, 0.0
      %467 = vadd.xlane.f32.xlu0 %v466
      %v468 = vpop.xlane.xlu0 %467
      %v469 = vsel %vm260, %v431, 0.0
      %470 = vadd.xlane.f32.xlu0 %v469
      %v471 = vpop.xlane.xlu0 %470
      %v472 = vsel %vm260, %v432, 0.0
      %473 = vadd.xlane.f32.xlu0 %v472
      %v474 = vpop.xlane.xlu0 %473
      %v475 = vsel %vm260, %v433, 0.0
      %476 = vadd.xlane.f32.xlu0 %v475
      %v477 = vpop.xlane.xlu0 %476
      %v478 = vsel %vm260, %v434, 0.0
      %479 = vadd.xlane.f32.xlu0 %v478
      %v480 = vpop.xlane.xlu0 %479
      %v481 = vsel %vm260, %v435, 0.0
      %482 = vadd.xlane.f32.xlu0 %v481
      %v483 = vpop.xlane.xlu0 %482
      %v484 = vsel %vm260, %v436, 0.0
      %485 = vadd.xlane.f32.xlu0 %v484
      %v486 = vpop.xlane.xlu0 %485
      %v487 = vsel %vm260, %v437, 0.0
      %488 = vadd.xlane.f32.xlu0 %v487
      %v489 = vpop.xlane.xlu0 %488
      %v490 = vsel %vm260, %v438, 0.0
      %491 = vadd.xlane.f32.xlu0 %v490
      %v492 = vpop.xlane.xlu0 %491
      %v493 = vsel %vm260, %v439, 0.0
      %494 = vadd.xlane.f32.xlu0 %v493
      %v495 = vpop.xlane.xlu0 %494
      %v496 = vsel %vm260, %v440, 0.0
      %497 = vadd.xlane.f32.xlu0 %v496
      %v498 = vpop.xlane.xlu0 %497
      %v499 = vsel %vm260, %v441, 0.0
      %500 = vadd.xlane.f32.xlu0 %v499
      %v501 = vpop.xlane.xlu0 %500
      %v502 = vsel %vm260, %v442, 0.0
      %503 = vadd.xlane.f32.xlu0 %v502
      %v504 = vpop.xlane.xlu0 %503
      %v505 = vsel %vm260, %v443, 0.0
      %506 = vadd.xlane.f32.xlu0 %v505
      %v507 = vpop.xlane.xlu0 %506
      %v508 = vsel %vm260, %v444, 0.0
      %509 = vadd.xlane.f32.xlu0 %v508
      %v510 = vpop.xlane.xlu0 %509
      %v511 = vsel %vm260, %v445, 0.0
      %512 = vadd.xlane.f32.xlu0 %v511
      %v513 = vpop.xlane.xlu0 %512
      %v514 = vsel %vm260, %v446, 0.0
      %515 = vadd.xlane.f32.xlu0 %v514
      %v516 = vpop.xlane.xlu0 %515
      %v517 = vsel %vm260, %v447, 0.0
      %518 = vadd.xlane.f32.xlu0 %v517
      %v519 = vpop.xlane.xlu0 %518
      %v520 = vsel %vm260, %v448, 0.0
      %521 = vadd.xlane.f32.xlu0 %v520
      %v522 = vpop.xlane.xlu0 %521
      %v523 = vsel %vm260, %v449, 0.0
      %524 = vadd.xlane.f32.xlu0 %v523
      %v525 = vpop.xlane.xlu0 %524
      %v526 = vsel %vm260, %v450, 0.0
      %527 = vadd.xlane.f32.xlu0 %v526
      %v528 = vpop.xlane.xlu0 %527
      %v529 = vsel %vm260, %v451, 0.0
      %530 = vadd.xlane.f32.xlu0 %v529
      %v531 = vpop.xlane.xlu0 %530
      %v532 = vsel %vm260, %v452, 0.0
      %533 = vadd.xlane.f32.xlu0 %v532
      %v534 = vpop.xlane.xlu0 %533
      %v535 = vsel %vm260, %v453, 0.0
      %536 = vadd.xlane.f32.xlu0 %v535
      %v537 = vpop.xlane.xlu0 %536
      %v538 = vsel %vm260, %v454, 0.0
      %539 = vadd.xlane.f32.xlu0 %v538
      %v540 = vpop.xlane.xlu0 %539
      %v541 = vsel %vm260, %v455, 0.0
      %542 = vadd.xlane.f32.xlu0 %v541
      %v543 = vpop.xlane.xlu0 %542
      %v544 = vsel %vm260, %v456, 0.0
      %545 = vadd.xlane.f32.xlu0 %v544
      %v546 = vpop.xlane.xlu0 %545
      %v547 = vsel %vm260, %v457, 0.0
      %548 = vadd.xlane.f32.xlu0 %v547
      %v549 = vpop.xlane.xlu0 %548
      %v550 = vsel %vm260, %v458, 0.0
      %551 = vadd.xlane.f32.xlu0 %v550
      %v552 = vpop.xlane.xlu0 %551
      %v553 = vsel %vm260, %v459, 0.0
      %554 = vadd.xlane.f32.xlu0 %v553
      %v555 = vpop.xlane.xlu0 %554
      %v556 = vmul.f32 %v462, %v363
      %v557 = vmul.f32 %v465, %v363
      %v558 = vmul.f32 %v468, %v363
      %v559 = vmul.f32 %v471, %v363
      %v560 = vmul.f32 %v474, %v363
      %v561 = vmul.f32 %v477, %v363
      %v562 = vmul.f32 %v480, %v363
      %v563 = vmul.f32 %v483, %v363
      %v564 = vmul.f32 %v486, %v363
      %v565 = vmul.f32 %v489, %v363
      %v566 = vmul.f32 %v492, %v363
      %v567 = vmul.f32 %v495, %v363
      %v568 = vmul.f32 %v498, %v363
      %v569 = vmul.f32 %v501, %v363
      %v570 = vmul.f32 %v504, %v363
      %v571 = vmul.f32 %v507, %v363
      %v572 = vmul.f32 %v510, %v363
      %v573 = vmul.f32 %v513, %v363
      %v574 = vmul.f32 %v516, %v363
      %v575 = vmul.f32 %v519, %v363
      %v576 = vmul.f32 %v522, %v363
      %v577 = vmul.f32 %v525, %v363
      %v578 = vmul.f32 %v528, %v363
      %v579 = vmul.f32 %v531, %v363
      %v580 = vmul.f32 %v534, %v363
      %v581 = vmul.f32 %v537, %v363
      %v582 = vmul.f32 %v540, %v363
      %v583 = vmul.f32 %v543, %v363
      %v584 = vmul.f32 %v546, %v363
      %v585 = vmul.f32 %v549, %v363
      %v586 = vmul.f32 %v552, %v363
      %v587 = vmul.f32 %v555, %v363
      %v588 = vadd.f32 %v556, 1e-05
      %v589 = vadd.f32 %v557, 1e-05
      %v590 = vadd.f32 %v558, 1e-05
      %v591 = vadd.f32 %v559, 1e-05
      %v592 = vadd.f32 %v560, 1e-05
      %v593 = vadd.f32 %v561, 1e-05
      %v594 = vadd.f32 %v562, 1e-05
      %v595 = vadd.f32 %v563, 1e-05
      %v596 = vadd.f32 %v564, 1e-05
      %v597 = vadd.f32 %v565, 1e-05
      %v598 = vadd.f32 %v566, 1e-05
      %v599 = vadd.f32 %v567, 1e-05
      %v600 = vadd.f32 %v568, 1e-05
      %v601 = vadd.f32 %v569, 1e-05
      %v602 = vadd.f32 %v570, 1e-05
      %v603 = vadd.f32 %v571, 1e-05
      %v604 = vadd.f32 %v572, 1e-05
      %v605 = vadd.f32 %v573, 1e-05
      %v606 = vadd.f32 %v574, 1e-05
      %v607 = vadd.f32 %v575, 1e-05
      %v608 = vadd.f32 %v576, 1e-05
      %v609 = vadd.f32 %v577, 1e-05
      %v610 = vadd.f32 %v578, 1e-05
      %v611 = vadd.f32 %v579, 1e-05
      %v612 = vadd.f32 %v580, 1e-05
      %v613 = vadd.f32 %v581, 1e-05
      %v614 = vadd.f32 %v582, 1e-05
      %v615 = vadd.f32 %v583, 1e-05
      %v616 = vadd.f32 %v584, 1e-05
      %v617 = vadd.f32 %v585, 1e-05
      %v618 = vadd.f32 %v586, 1e-05
      %v619 = vadd.f32 %v587, 1e-05
      %v620 = vrsqrt.pop %v588
      %v621 = vmul.f32 %v620, %v588
      %v622 = vmul.f32 %v621, %v620
      %v623 = vmul.f32 0.5, %v622
      %v624 = vsub.f32 1.5, %v623
      %v625 = vmul.f32 %v620, %v624
      %vm626 = vweird.f32 %v588
      %vm627 = vweird.f32 %v620
      %vm628 = vmor %vm626, %vm627
      %v629 = vsel %vm628, %v620, %v625
      %v630 = vrsqrt.pop %v589
      %v631 = vmul.f32 %v630, %v589
      %v632 = vmul.f32 %v631, %v630
      %v633 = vmul.f32 0.5, %v632
      %v634 = vsub.f32 1.5, %v633
      %v635 = vmul.f32 %v630, %v634
      %vm636 = vweird.f32 %v589
      %vm637 = vweird.f32 %v630
      %vm638 = vmor %vm636, %vm637
      %v639 = vsel %vm638, %v630, %v635
      %v640 = vrsqrt.pop %v590
      %v641 = vmul.f32 %v640, %v590
      %v642 = vmul.f32 %v641, %v640
      %v643 = vmul.f32 0.5, %v642
      %v644 = vsub.f32 1.5, %v643
      %v645 = vmul.f32 %v640, %v644
      %vm646 = vweird.f32 %v590
      %vm647 = vweird.f32 %v640
      %vm648 = vmor %vm646, %vm647
      %v649 = vsel %vm648, %v640, %v645
      %v650 = vrsqrt.pop %v591
      %v651 = vmul.f32 %v650, %v591
      %v652 = vmul.f32 %v651, %v650
      %v653 = vmul.f32 0.5, %v652
      %v654 = vsub.f32 1.5, %v653
      %v655 = vmul.f32 %v650, %v654
      %vm656 = vweird.f32 %v591
      %vm657 = vweird.f32 %v650
      %vm658 = vmor %vm656, %vm657
      %v659 = vsel %vm658, %v650, %v655
      %v660 = vrsqrt.pop %v592
      %v661 = vmul.f32 %v660, %v592
      %v662 = vmul.f32 %v661, %v660
      %v663 = vmul.f32 0.5, %v662
      %v664 = vsub.f32 1.5, %v663
      %v665 = vmul.f32 %v660, %v664
      %vm666 = vweird.f32 %v592
      %vm667 = vweird.f32 %v660
      %vm668 = vmor %vm666, %vm667
      %v669 = vsel %vm668, %v660, %v665
      %v670 = vrsqrt.pop %v593
      %v671 = vmul.f32 %v670, %v593
      %v672 = vmul.f32 %v671, %v670
      %v673 = vmul.f32 0.5, %v672
      %v674 = vsub.f32 1.5, %v673
      %v675 = vmul.f32 %v670, %v674
      %vm676 = vweird.f32 %v593
      %vm677 = vweird.f32 %v670
      %vm678 = vmor %vm676, %vm677
      %v679 = vsel %vm678, %v670, %v675
      %v680 = vrsqrt.pop %v594
      %v681 = vmul.f32 %v680, %v594
      %v682 = vmul.f32 %v681, %v680
      %v683 = vmul.f32 0.5, %v682
      %v684 = vsub.f32 1.5, %v683
      %v685 = vmul.f32 %v680, %v684
      %vm686 = vweird.f32 %v594
      %vm687 = vweird.f32 %v680
      %vm688 = vmor %vm686, %vm687
      %v689 = vsel %vm688, %v680, %v685
      %v690 = vrsqrt.pop %v595
      %v691 = vmul.f32 %v690, %v595
      %v692 = vmul.f32 %v691, %v690
      %v693 = vmul.f32 0.5, %v692
      %v694 = vsub.f32 1.5, %v693
      %v695 = vmul.f32 %v690, %v694
      %vm696 = vweird.f32 %v595
      %vm697 = vweird.f32 %v690
      %vm698 = vmor %vm696, %vm697
      %v699 = vsel %vm698, %v690, %v695
      %v700 = vrsqrt.pop %v596
      %v701 = vmul.f32 %v700, %v596
      %v702 = vmul.f32 %v701, %v700
      %v703 = vmul.f32 0.5, %v702
      %v704 = vsub.f32 1.5, %v703
      %v705 = vmul.f32 %v700, %v704
      %vm706 = vweird.f32 %v596
      %vm707 = vweird.f32 %v700
      %vm708 = vmor %vm706, %vm707
      %v709 = vsel %vm708, %v700, %v705
      %v710 = vrsqrt.pop %v597
      %v711 = vmul.f32 %v710, %v597
      %v712 = vmul.f32 %v711, %v710
      %v713 = vmul.f32 0.5, %v712
      %v714 = vsub.f32 1.5, %v713
      %v715 = vmul.f32 %v710, %v714
      %vm716 = vweird.f32 %v597
      %vm717 = vweird.f32 %v710
      %vm718 = vmor %vm716, %vm717
      %v719 = vsel %vm718, %v710, %v715
      %v720 = vrsqrt.pop %v598
      %v721 = vmul.f32 %v720, %v598
      %v722 = vmul.f32 %v721, %v720
      %v723 = vmul.f32 0.5, %v722
      %v724 = vsub.f32 1.5, %v723
      %v725 = vmul.f32 %v720, %v724
      %vm726 = vweird.f32 %v598
      %vm727 = vweird.f32 %v720
      %vm728 = vmor %vm726, %vm727
      %v729 = vsel %vm728, %v720, %v725
      %v730 = vrsqrt.pop %v599
      %v731 = vmul.f32 %v730, %v599
      %v732 = vmul.f32 %v731, %v730
      %v733 = vmul.f32 0.5, %v732
      %v734 = vsub.f32 1.5, %v733
      %v735 = vmul.f32 %v730, %v734
      %vm736 = vweird.f32 %v599
      %vm737 = vweird.f32 %v730
      %vm738 = vmor %vm736, %vm737
      %v739 = vsel %vm738, %v730, %v735
      %v740 = vrsqrt.pop %v600
      %v741 = vmul.f32 %v740, %v600
      %v742 = vmul.f32 %v741, %v740
      %v743 = vmul.f32 0.5, %v742
      %v744 = vsub.f32 1.5, %v743
      %v745 = vmul.f32 %v740, %v744
      %vm746 = vweird.f32 %v600
      %vm747 = vweird.f32 %v740
      %vm748 = vmor %vm746, %vm747
      %v749 = vsel %vm748, %v740, %v745
      %v750 = vrsqrt.pop %v601
      %v751 = vmul.f32 %v750, %v601
      %v752 = vmul.f32 %v751, %v750
      %v753 = vmul.f32 0.5, %v752
      %v754 = vsub.f32 1.5, %v753
      %v755 = vmul.f32 %v750, %v754
      %vm756 = vweird.f32 %v601
      %vm757 = vweird.f32 %v750
      %vm758 = vmor %vm756, %vm757
      %v759 = vsel %vm758, %v750, %v755
      %v760 = vrsqrt.pop %v602
      %v761 = vmul.f32 %v760, %v602
      %v762 = vmul.f32 %v761, %v760
      %v763 = vmul.f32 0.5, %v762
      %v764 = vsub.f32 1.5, %v763
      %v765 = vmul.f32 %v760, %v764
      %vm766 = vweird.f32 %v602
      %vm767 = vweird.f32 %v760
      %vm768 = vmor %vm766, %vm767
      %v769 = vsel %vm768, %v760, %v765
      %v770 = vrsqrt.pop %v603
      %v771 = vmul.f32 %v770, %v603
      %v772 = vmul.f32 %v771, %v770
      %v773 = vmul.f32 0.5, %v772
      %v774 = vsub.f32 1.5, %v773
      %v775 = vmul.f32 %v770, %v774
      %vm776 = vweird.f32 %v603
      %vm777 = vweird.f32 %v770
      %vm778 = vmor %vm776, %vm777
      %v779 = vsel %vm778, %v770, %v775
      %v780 = vrsqrt.pop %v604
      %v781 = vmul.f32 %v780, %v604
      %v782 = vmul.f32 %v781, %v780
      %v783 = vmul.f32 0.5, %v782
      %v784 = vsub.f32 1.5, %v783
      %v785 = vmul.f32 %v780, %v784
      %vm786 = vweird.f32 %v604
      %vm787 = vweird.f32 %v780
      %vm788 = vmor %vm786, %vm787
      %v789 = vsel %vm788, %v780, %v785
      %v790 = vrsqrt.pop %v605
      %v791 = vmul.f32 %v790, %v605
      %v792 = vmul.f32 %v791, %v790
      %v793 = vmul.f32 0.5, %v792
      %v794 = vsub.f32 1.5, %v793
      %v795 = vmul.f32 %v790, %v794
      %vm796 = vweird.f32 %v605
      %vm797 = vweird.f32 %v790
      %vm798 = vmor %vm796, %vm797
      %v799 = vsel %vm798, %v790, %v795
      %v800 = vrsqrt.pop %v606
      %v801 = vmul.f32 %v800, %v606
      %v802 = vmul.f32 %v801, %v800
      %v803 = vmul.f32 0.5, %v802
      %v804 = vsub.f32 1.5, %v803
      %v805 = vmul.f32 %v800, %v804
      %vm806 = vweird.f32 %v606
      %vm807 = vweird.f32 %v800
      %vm808 = vmor %vm806, %vm807
      %v809 = vsel %vm808, %v800, %v805
      %v810 = vrsqrt.pop %v607
      %v811 = vmul.f32 %v810, %v607
      %v812 = vmul.f32 %v811, %v810
      %v813 = vmul.f32 0.5, %v812
      %v814 = vsub.f32 1.5, %v813
      %v815 = vmul.f32 %v810, %v814
      %vm816 = vweird.f32 %v607
      %vm817 = vweird.f32 %v810
      %vm818 = vmor %vm816, %vm817
      %v819 = vsel %vm818, %v810, %v815
      %v820 = vrsqrt.pop %v608
      %v821 = vmul.f32 %v820, %v608
      %v822 = vmul.f32 %v821, %v820
      %v823 = vmul.f32 0.5, %v822
      %v824 = vsub.f32 1.5, %v823
      %v825 = vmul.f32 %v820, %v824
      %vm826 = vweird.f32 %v608
      %vm827 = vweird.f32 %v820
      %vm828 = vmor %vm826, %vm827
      %v829 = vsel %vm828, %v820, %v825
      %v830 = vrsqrt.pop %v609
      %v831 = vmul.f32 %v830, %v609
      %v832 = vmul.f32 %v831, %v830
      %v833 = vmul.f32 0.5, %v832
      %v834 = vsub.f32 1.5, %v833
      %v835 = vmul.f32 %v830, %v834
      %vm836 = vweird.f32 %v609
      %vm837 = vweird.f32 %v830
      %vm838 = vmor %vm836, %vm837
      %v839 = vsel %vm838, %v830, %v835
      %v840 = vrsqrt.pop %v610
      %v841 = vmul.f32 %v840, %v610
      %v842 = vmul.f32 %v841, %v840
      %v843 = vmul.f32 0.5, %v842
      %v844 = vsub.f32 1.5, %v843
      %v845 = vmul.f32 %v840, %v844
      %vm846 = vweird.f32 %v610
      %vm847 = vweird.f32 %v840
      %vm848 = vmor %vm846, %vm847
      %v849 = vsel %vm848, %v840, %v845
      %v850 = vrsqrt.pop %v611
      %v851 = vmul.f32 %v850, %v611
      %v852 = vmul.f32 %v851, %v850
      %v853 = vmul.f32 0.5, %v852
      %v854 = vsub.f32 1.5, %v853
      %v855 = vmul.f32 %v850, %v854
      %vm856 = vweird.f32 %v611
      %vm857 = vweird.f32 %v850
      %vm858 = vmor %vm856, %vm857
      %v859 = vsel %vm858, %v850, %v855
      %v860 = vrsqrt.pop %v612
      %v861 = vmul.f32 %v860, %v612
      %v862 = vmul.f32 %v861, %v860
      %v863 = vmul.f32 0.5, %v862
      %v864 = vsub.f32 1.5, %v863
      %v865 = vmul.f32 %v860, %v864
      %vm866 = vweird.f32 %v612
      %vm867 = vweird.f32 %v860
      %vm868 = vmor %vm866, %vm867
      %v869 = vsel %vm868, %v860, %v865
      %v870 = vrsqrt.pop %v613
      %v871 = vmul.f32 %v870, %v613
      %v872 = vmul.f32 %v871, %v870
      %v873 = vmul.f32 0.5, %v872
      %v874 = vsub.f32 1.5, %v873
      %v875 = vmul.f32 %v870, %v874
      %vm876 = vweird.f32 %v613
      %vm877 = vweird.f32 %v870
      %vm878 = vmor %vm876, %vm877
      %v879 = vsel %vm878, %v870, %v875
      %v880 = vrsqrt.pop %v614
      %v881 = vmul.f32 %v880, %v614
      %v882 = vmul.f32 %v881, %v880
      %v883 = vmul.f32 0.5, %v882
      %v884 = vsub.f32 1.5, %v883
      %v885 = vmul.f32 %v880, %v884
      %vm886 = vweird.f32 %v614
      %vm887 = vweird.f32 %v880
      %vm888 = vmor %vm886, %vm887
      %v889 = vsel %vm888, %v880, %v885
      %v890 = vrsqrt.pop %v615
      %v891 = vmul.f32 %v890, %v615
      %v892 = vmul.f32 %v891, %v890
      %v893 = vmul.f32 0.5, %v892
      %v894 = vsub.f32 1.5, %v893
      %v895 = vmul.f32 %v890, %v894
      %vm896 = vweird.f32 %v615
      %vm897 = vweird.f32 %v890
      %vm898 = vmor %vm896, %vm897
      %v899 = vsel %vm898, %v890, %v895
      %v900 = vrsqrt.pop %v616
      %v901 = vmul.f32 %v900, %v616
      %v902 = vmul.f32 %v901, %v900
      %v903 = vmul.f32 0.5, %v902
      %v904 = vsub.f32 1.5, %v903
      %v905 = vmul.f32 %v900, %v904
      %vm906 = vweird.f32 %v616
      %vm907 = vweird.f32 %v900
      %vm908 = vmor %vm906, %vm907
      %v909 = vsel %vm908, %v900, %v905
      %v910 = vrsqrt.pop %v617
      %v911 = vmul.f32 %v910, %v617
      %v912 = vmul.f32 %v911, %v910
      %v913 = vmul.f32 0.5, %v912
      %v914 = vsub.f32 1.5, %v913
      %v915 = vmul.f32 %v910, %v914
      %vm916 = vweird.f32 %v617
      %vm917 = vweird.f32 %v910
      %vm918 = vmor %vm916, %vm917
      %v919 = vsel %vm918, %v910, %v915
      %v920 = vrsqrt.pop %v618
      %v921 = vmul.f32 %v920, %v618
      %v922 = vmul.f32 %v921, %v920
      %v923 = vmul.f32 0.5, %v922
      %v924 = vsub.f32 1.5, %v923
      %v925 = vmul.f32 %v920, %v924
      %vm926 = vweird.f32 %v618
      %vm927 = vweird.f32 %v920
      %vm928 = vmor %vm926, %vm927
      %v929 = vsel %vm928, %v920, %v925
      %v930 = vrsqrt.pop %v619
      %v931 = vmul.f32 %v930, %v619
      %v932 = vmul.f32 %v931, %v930
      %v933 = vmul.f32 0.5, %v932
      %v934 = vsub.f32 1.5, %v933
      %v935 = vmul.f32 %v930, %v934
      %vm936 = vweird.f32 %v619
      %vm937 = vweird.f32 %v930
      %vm938 = vmor %vm936, %vm937
      %v939 = vsel %vm938, %v930, %v935
      %v940 = vmul.f32 %v396, %v629
      %v941 = vmul.f32 %v397, %v639
      %v942 = vmul.f32 %v398, %v649
      %v943 = vmul.f32 %v399, %v659
      %v944 = vmul.f32 %v400, %v669
      %v945 = vmul.f32 %v401, %v679
      %v946 = vmul.f32 %v402, %v689
      %v947 = vmul.f32 %v403, %v699
      %v948 = vmul.f32 %v404, %v709
      %v949 = vmul.f32 %v405, %v719
      %v950 = vmul.f32 %v406, %v729
      %v951 = vmul.f32 %v407, %v739
      %v952 = vmul.f32 %v408, %v749
      %v953 = vmul.f32 %v409, %v759
      %v954 = vmul.f32 %v410, %v769
      %v955 = vmul.f32 %v411, %v779
      %v956 = vmul.f32 %v412, %v789
      %v957 = vmul.f32 %v413, %v799
      %v958 = vmul.f32 %v414, %v809
      %v959 = vmul.f32 %v415, %v819
      %v960 = vmul.f32 %v416, %v829
      %v961 = vmul.f32 %v417, %v839
      %v962 = vmul.f32 %v418, %v849
      %v963 = vmul.f32 %v419, %v859
      %v964 = vmul.f32 %v420, %v869
      %v965 = vmul.f32 %v421, %v879
      %v966 = vmul.f32 %v422, %v889
      %v967 = vmul.f32 %v423, %v899
      %v968 = vmul.f32 %v424, %v909
      %v969 = vmul.f32 %v425, %v919
      %v970 = vmul.f32 %v426, %v929
      %v971 = vmul.f32 %v427, %v939
      %v972 = vld [vmem:[%s1] sm:$0x1]
      %v974 = vperm.slane %v972, 0
      %v976 = vmul.f32 %v940, %v974
      %v977 = vmul.f32 %v941, %v974
      %v978 = vmul.f32 %v942, %v974
      %v979 = vmul.f32 %v943, %v974
      %v980 = vmul.f32 %v944, %v974
      %v981 = vmul.f32 %v945, %v974
      %v982 = vmul.f32 %v946, %v974
      %v983 = vmul.f32 %v947, %v974
      %v984 = vmul.f32 %v948, %v974
      %v985 = vmul.f32 %v949, %v974
      %v986 = vmul.f32 %v950, %v974
      %v987 = vmul.f32 %v951, %v974
      %v988 = vmul.f32 %v952, %v974
      %v989 = vmul.f32 %v953, %v974
      %v990 = vmul.f32 %v954, %v974
      %v991 = vmul.f32 %v955, %v974
      %v992 = vmul.f32 %v956, %v974
      %v993 = vmul.f32 %v957, %v974
      %v994 = vmul.f32 %v958, %v974
      %v995 = vmul.f32 %v959, %v974
      %v996 = vmul.f32 %v960, %v974
      %v997 = vmul.f32 %v961, %v974
      %v998 = vmul.f32 %v962, %v974
      %v999 = vmul.f32 %v963, %v974
      %v1000 = vmul.f32 %v964, %v974
      %v1001 = vmul.f32 %v965, %v974
      %v1002 = vmul.f32 %v966, %v974
      %v1003 = vmul.f32 %v967, %v974
      %v1004 = vmul.f32 %v968, %v974
      %v1005 = vmul.f32 %v969, %v974
      %v1006 = vmul.f32 %v970, %v974
      %v1007 = vmul.f32 %v971, %v974
      %v1008 = vld [vmem:[%s2] sm:$0x1]
      %v1010 = vperm.slane %v1008, 0
      %v1012 = vadd.f32 %v976, %v1010
      %v1013 = vadd.f32 %v977, %v1010
      %v1014 = vadd.f32 %v978, %v1010
      %v1015 = vadd.f32 %v979, %v1010
      %v1016 = vadd.f32 %v980, %v1010
      %v1017 = vadd.f32 %v981, %v1010
      %v1018 = vadd.f32 %v982, %v1010
      %v1019 = vadd.f32 %v983, %v1010
      %v1020 = vadd.f32 %v984, %v1010
      %v1021 = vadd.f32 %v985, %v1010
      %v1022 = vadd.f32 %v986, %v1010
      %v1023 = vadd.f32 %v987, %v1010
      %v1024 = vadd.f32 %v988, %v1010
      %v1025 = vadd.f32 %v989, %v1010
      %v1026 = vadd.f32 %v990, %v1010
      %v1027 = vadd.f32 %v991, %v1010
      %v1028 = vadd.f32 %v992, %v1010
      %v1029 = vadd.f32 %v993, %v1010
      %v1030 = vadd.f32 %v994, %v1010
      %v1031 = vadd.f32 %v995, %v1010
      %v1032 = vadd.f32 %v996, %v1010
      %v1033 = vadd.f32 %v997, %v1010
      %v1034 = vadd.f32 %v998, %v1010
      %v1035 = vadd.f32 %v999, %v1010
      %v1036 = vadd.f32 %v1000, %v1010
      %v1037 = vadd.f32 %v1001, %v1010
      %v1038 = vadd.f32 %v1002, %v1010
      %v1039 = vadd.f32 %v1003, %v1010
      %v1040 = vadd.f32 %v1004, %v1010
      %v1041 = vadd.f32 %v1005, %v1010
      %v1042 = vadd.f32 %v1006, %v1010
      %v1043 = vadd.f32 %v1007, %v1010
      %v1044 = vld [vmem:[%s3] sm:$0xff]
      %v1045 = vld [vmem:[%s4] sm:$0x1]
      %v1047 = vperm.slane %v1045, 0
      %v1050 = vsel %vm260, %v1012, 0
      %v1053 = vsel %vm260, %v1013, 0
      %v1056 = vsel %vm260, %v1014, 0
      %v1059 = vsel %vm260, %v1015, 0
      %v1062 = vsel %vm260, %v1016, 0
      %v1065 = vsel %vm260, %v1017, 0
      %v1068 = vsel %vm260, %v1018, 0
      %v1071 = vsel %vm260, %v1019, 0
      %v1074 = vsel %vm260, %v1020, 0
      %v1077 = vsel %vm260, %v1021, 0
      %v1080 = vsel %vm260, %v1022, 0
      %v1083 = vsel %vm260, %v1023, 0
      %v1086 = vsel %vm260, %v1024, 0
      %v1089 = vsel %vm260, %v1025, 0
      %v1092 = vsel %vm260, %v1026, 0
      %v1095 = vsel %vm260, %v1027, 0
      %v1098 = vsel %vm260, %v1028, 0
      %v1101 = vsel %vm260, %v1029, 0
      %v1104 = vsel %vm260, %v1030, 0
      %v1107 = vsel %vm260, %v1031, 0
      %v1110 = vsel %vm260, %v1032, 0
      %v1113 = vsel %vm260, %v1033, 0
      %v1116 = vsel %vm260, %v1034, 0
      %v1119 = vsel %vm260, %v1035, 0
      %v1122 = vsel %vm260, %v1036, 0
      %v1125 = vsel %vm260, %v1037, 0
      %v1128 = vsel %vm260, %v1038, 0
      %v1131 = vsel %vm260, %v1039, 0
      %v1134 = vsel %vm260, %v1040, 0
      %v1137 = vsel %vm260, %v1041, 0
      %v1140 = vsel %vm260, %v1042, 0
      %v1143 = vsel %vm260, %v1043, 0
      %1145 = vmatpush.msra.mxu0 0.0
      %1146 = vmatpush.msra.mxu0 0.0
      %1147 = vmatpush.msra.mxu0 0.0
      %1148 = vmatpush.msra.mxu0 0.0
      %1149 = vmatpush.msra.mxu0 0.0
      %1150 = vmatpush.msra.mxu0 0.0
      %1151 = vmatpush.msra.mxu0 0.0
      %1152 = vmatpush.msra.mxu0 0.0
      %1153 = vmatpush.msra.mxu0 0.0
      %1154 = vmatpush.msra.mxu0 0.0
      %1155 = vmatpush.msra.mxu0 0.0
      %1156 = vmatpush.msra.mxu0 0.0
      %1157 = vmatpush.msra.mxu0 0.0
      %1158 = vmatpush.msra.mxu0 0.0
      %1159 = vmatpush.msra.mxu0 0.0
      %1160 = vmatpush.msra.mxu0 %v1044
      %1161 = vmatmul.f32.gmra.mxu0 %v1050
      %v1162 = vpop.f32.mrf.mxu0
      %v1163 = vadd.f32 %v1047, %v1162
      %1164 = vmatmul.f32.gmra.mxu0 %v1053
      %v1165 = vpop.f32.mrf.mxu0
      %v1166 = vadd.f32 %v1047, %v1165
      %1167 = vmatmul.f32.gmra.mxu0 %v1056
      %v1168 = vpop.f32.mrf.mxu0
      %v1169 = vadd.f32 %v1047, %v1168
      %1170 = vmatmul.f32.gmra.mxu0 %v1059
      %v1171 = vpop.f32.mrf.mxu0
      %v1172 = vadd.f32 %v1047, %v1171
      %1173 = vmatmul.f32.gmra.mxu0 %v1062
      %v1174 = vpop.f32.mrf.mxu0
      %v1175 = vadd.f32 %v1047, %v1174
      %1176 = vmatmul.f32.gmra.mxu0 %v1065
      %v1177 = vpop.f32.mrf.mxu0
      %v1178 = vadd.f32 %v1047, %v1177
      %1179 = vmatmul.f32.gmra.mxu0 %v1068
      %v1180 = vpop.f32.mrf.mxu0
      %v1181 = vadd.f32 %v1047, %v1180
      %1182 = vmatmul.f32.gmra.mxu0 %v1071
      %v1183 = vpop.f32.mrf.mxu0
      %v1184 = vadd.f32 %v1047, %v1183
      %1185 = vmatmul.f32.gmra.mxu0 %v1074
      %v1186 = vpop.f32.mrf.mxu0
      %v1187 = vadd.f32 %v1047, %v1186
      %1188 = vmatmul.f32.gmra.mxu0 %v1077
      %v1189 = vpop.f32.mrf.mxu0
      %v1190 = vadd.f32 %v1047, %v1189
      %1191 = vmatmul.f32.gmra.mxu0 %v1080
      %v1192 = vpop.f32.mrf.mxu0
      %v1193 = vadd.f32 %v1047, %v1192
      %1194 = vmatmul.f32.gmra.mxu0 %v1083
      %v1195 = vpop.f32.mrf.mxu0
      %v1196 = vadd.f32 %v1047, %v1195
      %1197 = vmatmul.f32.gmra.mxu0 %v1086
      %v1198 = vpop.f32.mrf.mxu0
      %v1199 = vadd.f32 %v1047, %v1198
      %1200 = vmatmul.f32.gmra.mxu0 %v1089
      %v1201 = vpop.f32.mrf.mxu0
      %v1202 = vadd.f32 %v1047, %v1201
      %1203 = vmatmul.f32.gmra.mxu0 %v1092
      %v1204 = vpop.f32.mrf.mxu0
      %v1205 = vadd.f32 %v1047, %v1204
      %1206 = vmatmul.f32.gmra.mxu0 %v1095
      %v1207 = vpop.f32.mrf.mxu0
      %v1208 = vadd.f32 %v1047, %v1207
      %1209 = vmatmul.f32.gmra.mxu0 %v1098
      %v1210 = vpop.f32.mrf.mxu0
      %v1211 = vadd.f32 %v1047, %v1210
      %1212 = vmatmul.f32.gmra.mxu0 %v1101
      %v1213 = vpop.f32.mrf.mxu0
      %v1214 = vadd.f32 %v1047, %v1213
      %1215 = vmatmul.f32.gmra.mxu0 %v1104
      %v1216 = vpop.f32.mrf.mxu0
      %v1217 = vadd.f32 %v1047, %v1216
      %1218 = vmatmul.f32.gmra.mxu0 %v1107
      %v1219 = vpop.f32.mrf.mxu0
      %v1220 = vadd.f32 %v1047, %v1219
      %1221 = vmatmul.f32.gmra.mxu0 %v1110
      %v1222 = vpop.f32.mrf.mxu0
      %v1223 = vadd.f32 %v1047, %v1222
      %1224 = vmatmul.f32.gmra.mxu0 %v1113
      %v1225 = vpop.f32.mrf.mxu0
      %v1226 = vadd.f32 %v1047, %v1225
      %1227 = vmatmul.f32.gmra.mxu0 %v1116
      %v1228 = vpop.f32.mrf.mxu0
      %v1229 = vadd.f32 %v1047, %v1228
      %1230 = vmatmul.f32.gmra.mxu0 %v1119
      %v1231 = vpop.f32.mrf.mxu0
      %v1232 = vadd.f32 %v1047, %v1231
      %1233 = vmatmul.f32.gmra.mxu0 %v1122
      %v1234 = vpop.f32.mrf.mxu0
      %v1235 = vadd.f32 %v1047, %v1234
      %1236 = vmatmul.f32.gmra.mxu0 %v1125
      %v1237 = vpop.f32.mrf.mxu0
      %v1238 = vadd.f32 %v1047, %v1237
      %1239 = vmatmul.f32.gmra.mxu0 %v1128
      %v1240 = vpop.f32.mrf.mxu0
      %v1241 = vadd.f32 %v1047, %v1240
      %1242 = vmatmul.f32.gmra.mxu0 %v1131
      %v1243 = vpop.f32.mrf.mxu0
      %v1244 = vadd.f32 %v1047, %v1243
      %1245 = vmatmul.f32.gmra.mxu0 %v1134
      %v1246 = vpop.f32.mrf.mxu0
      %v1247 = vadd.f32 %v1047, %v1246
      %1248 = vmatmul.f32.gmra.mxu0 %v1137
      %v1249 = vpop.f32.mrf.mxu0
      %v1250 = vadd.f32 %v1047, %v1249
      %1251 = vmatmul.f32.gmra.mxu0 %v1140
      %v1252 = vpop.f32.mrf.mxu0
      %v1253 = vadd.f32 %v1047, %v1252
      %1254 = vmatmul.f32.gmra.mxu0 %v1143
      %v1255 = vpop.f32.mrf.mxu0
      %v1256 = vadd.f32 %v1047, %v1255
      %1257 = vdwg.mxu0
      %vm1258 = vcmask 195584
      %1259 = vst.msk [vmem:[%s226] sm:$0xff] %vm1258, %v1163
      %1260 = vst.msk [vmem:[%s226 + $0x8] sm:$0xff] %vm1258, %v1166
      %1261 = vst.msk [vmem:[%s226 + $0x10] sm:$0xff] %vm1258, %v1169
      %1262 = vst.msk [vmem:[%s226 + $0x18] sm:$0xff] %vm1258, %v1172
      %1263 = vst.msk [vmem:[%s226 + $0x20] sm:$0xff] %vm1258, %v1175
      %1264 = vst.msk [vmem:[%s226 + $0x28] sm:$0xff] %vm1258, %v1178
      %1265 = vst.msk [vmem:[%s226 + $0x30] sm:$0xff] %vm1258, %v1181
      %1266 = vst.msk [vmem:[%s226 + $0x38] sm:$0xff] %vm1258, %v1184
      %1267 = vst.msk [vmem:[%s226 + $0x40] sm:$0xff] %vm1258, %v1187
      %1268 = vst.msk [vmem:[%s226 + $0x48] sm:$0xff] %vm1258, %v1190
      %1269 = vst.msk [vmem:[%s226 + $0x50] sm:$0xff] %vm1258, %v1193
      %1270 = vst.msk [vmem:[%s226 + $0x58] sm:$0xff] %vm1258, %v1196
      %1271 = vst.msk [vmem:[%s226 + $0x60] sm:$0xff] %vm1258, %v1199
      %1272 = vst.msk [vmem:[%s226 + $0x68] sm:$0xff] %vm1258, %v1202
      %1273 = vst.msk [vmem:[%s226 + $0x70] sm:$0xff] %vm1258, %v1205
      %1274 = vst.msk [vmem:[%s226 + $0x78] sm:$0xff] %vm1258, %v1208
      %1275 = vst.msk [vmem:[%s226 + $0x80] sm:$0xff] %vm1258, %v1211
      %1276 = vst.msk [vmem:[%s226 + $0x88] sm:$0xff] %vm1258, %v1214
      %1277 = vst.msk [vmem:[%s226 + $0x90] sm:$0xff] %vm1258, %v1217
      %1278 = vst.msk [vmem:[%s226 + $0x98] sm:$0xff] %vm1258, %v1220
      %1279 = vst.msk [vmem:[%s226 + $0xa0] sm:$0xff] %vm1258, %v1223
      %1280 = vst.msk [vmem:[%s226 + $0xa8] sm:$0xff] %vm1258, %v1226
      %1281 = vst.msk [vmem:[%s226 + $0xb0] sm:$0xff] %vm1258, %v1229
      %1282 = vst.msk [vmem:[%s226 + $0xb8] sm:$0xff] %vm1258, %v1232
      %1283 = vst.msk [vmem:[%s226 + $0xc0] sm:$0xff] %vm1258, %v1235
      %1284 = vst.msk [vmem:[%s226 + $0xc8] sm:$0xff] %vm1258, %v1238
      %1285 = vst.msk [vmem:[%s226 + $0xd0] sm:$0xff] %vm1258, %v1241
      %1286 = vst.msk [vmem:[%s226 + $0xd8] sm:$0xff] %vm1258, %v1244
      %1287 = vst.msk [vmem:[%s226 + $0xe0] sm:$0xff] %vm1258, %v1247
      %1288 = vst.msk [vmem:[%s226 + $0xe8] sm:$0xff] %vm1258, %v1250
      %1289 = vst.msk [vmem:[%s226 + $0xf0] sm:$0xff] %vm1258, %v1253
      %1290 = vst.msk [vmem:[%s226 + $0xf8] sm:$0xff] %vm1258, %v1256
      %s1291 = smul.u32 32, %s16
      %p1292 = scmp.lt.s32.totalorder %s1291, 63
      %s1293 = scalar_select %p1292, %s1291, 63
      %s1294 = smul.addr %s1293, 8
      %s1295 = scalar_lea.vmem %s5, %s1294
      // Predicated region
      $region41: #{tpu_custom_call.1} parent=39 // pred_check
        %p1296 = pneg %p144
      $region42: #{tpu_custom_call.1} parent=39 // pred_check_branch
        %1298 = sbr.rel (%p1296) target = $region44
      $region43: #{tpu_custom_call.1} parent=39 // pred_region
        %s1299 = smul.u32 32, %s16
      $region44: #{tpu_custom_call.1} parent=39 // pred_fallthru
        _
    $region40: #{tpu_custom_call.1} parent=5 // pred_fallthru
      _
    %p1300 = scmp.le.s32.totalorder 2, %s11
    // Predicated region
    $region45: #{tpu_custom_call.1} parent=5 // pred_check
      %p1301 = pneg %p1300
    $region46: #{tpu_custom_call.1} parent=5 // pred_check_branch
      %1303 = sbr.rel (%p1301) target = $region48
    $region47: #{tpu_custom_call.1} parent=5 // pred_region
      %s1304 = ssub.s32 %s11, 2
      // Predicated region
      $region49: #{tpu_custom_call.1} parent=47 // pred_check
        %p1305 = pneg %p150
      $region50: #{tpu_custom_call.1} parent=47 // pred_check_branch
        %1307 = sbr.rel (%p1305) target = $region52
      $region51: #{tpu_custom_call.1} parent=47 // pred_region
        %s1308 = smul.u32 32, %s17
        %p1309 = scmp.lt.s32.totalorder %s1308, 63
        %s1310 = scalar_select %p1309, %s1308, 63
        %s1311 = smul.addr %s1310, 8
        %s1312 = scalar_lea.vmem %s5, %s1311
      $region52: #{tpu_custom_call.1} parent=47 // pred_fallthru
        _
    $region48: #{tpu_custom_call.1} parent=5 // pred_fallthru
      _
  $region6: #{tpu_custom_call.1} parent=0 // loop_footer
    %s15 = sadd.s32 1, %s11
  $region7: #{tpu_custom_call.1} parent=0 // loop_footer_branch
    %10 = sbr.rel target = $region3
  $region8: #{tpu_custom_call.1} parent=0 // loop_exit
    _

</llo_original>
